<compile_context>
chip_gen: v7x
topology: tpu7x:2x2x1
jax: 0.10.0
libtpu: 0.0.40
codegen_flags: <defaults>
</compile_context>

<pallas_src>
import jax
import jax.numpy as jnp
from jax import lax
from jax.experimental import pallas as pl
from jax.experimental.pallas import tpu as pltpu

EMBEDDING_DIM = 256
TEXT_LSTM_HIDDEN = 128
FC_HIDDEN = 64
FC_HIDDEN2 = 64
LANE = 128


def _sigmoid_via_tanh(x):
    # sigmoid(x) == 0.5*(tanh(0.5*x)+1): one EUP push per vreg instead of two.
    return 0.5 * (jnp.tanh(0.5 * x) + 1.0)


def _genetic_kernel(gx_ref,            # (TT, BB, 4H) bf16  gathered gate pre-activations
                    whh_ref,           # (H, 4H)      bf16
                    w1_ref, b1_ref,    # (H, FP)  bf16, (1, FP)  f32
                    w2_ref, b2_ref,    # (FP, FP) bf16, (1, FP)  f32
                    wo_ref, bo_ref,    # (FP, CPAD) bf16, (1, CPAD) f32
                    out_ref,           # (BB, CPAD)   f32
                    h_scr, c_scr):     # (BB, H)      f32  persistent across T chunks
    t_chunk = pl.program_id(1)
    n_chunks = pl.num_programs(1)
    TT, BB, H4 = gx_ref.shape
    H = H4 // 4

    # Reset recurrent state at the start of each sequence (first time chunk).
    @pl.when(t_chunk == 0)
    def _():
        h_scr[...] = jnp.zeros_like(h_scr)
        c_scr[...] = jnp.zeros_like(c_scr)

    # Serial LSTM recurrence.  Only h @ W_hh remains on the critical path:
    # the input projection (x @ W_ih + b) was folded into the embedding table.
    # TODO(synk): if the bundle dump shows a per-step RHS weight push, switch to
    # pltpu.matmul_push_rhs once per chunk + matmul_acc_lhs/matmul_pop per step.
    def step(t, carry):
        h, c = carry
        gates = (jnp.dot(h.astype(whh_ref.dtype), whh_ref[...],
                         preferred_element_type=jnp.float32)
                 + gx_ref[t].astype(jnp.float32))            # (BB, 4H); gate order i,f,g,o
        i_g = _sigmoid_via_tanh(gates[:, 0 * H:1 * H])
        f_g = _sigmoid_via_tanh(gates[:, 1 * H:2 * H])
        g_g = jnp.tanh(gates[:, 2 * H:3 * H])
        o_g = _sigmoid_via_tanh(gates[:, 3 * H:4 * H])
        c_new = f_g * c + i_g * g_g
        h_new = o_g * jnp.tanh(c_new)
        return h_new, c_new

    # Partial unroll: LLO visibility without blowing up vreg live ranges.
    h, c = lax.fori_loop(0, TT, step, (h_scr[...], c_scr[...]),
                         unroll=min(TT, 8))
    h_scr[...] = h
    c_scr[...] = c

    # MLP head on the final hidden state, only on the last time chunk.
    @pl.when(t_chunk == n_chunks - 1)
    def _():
        feat = h.astype(w1_ref.dtype)                        # h_n[-1]  (BB, H)
        x1 = jnp.maximum(
            jnp.dot(feat, w1_ref[...], preferred_element_type=jnp.float32)
            + b1_ref[...], 0.0)
        x2 = jnp.maximum(
            jnp.dot(x1.astype(w2_ref.dtype), w2_ref[...],
                    preferred_element_type=jnp.float32)
            + b2_ref[...], 0.0)
        # Dropout(0.6): identity in eval mode.
        # TODO(synk): training-mode dropout (PRNG mask + 1/(1-p) scaling) not implemented.
        out_ref[...] = (jnp.dot(x2.astype(wo_ref.dtype), wo_ref[...],
                                preferred_element_type=jnp.float32)
                        + bo_ref[...])


def _pick_block(n, cap):
    """Largest divisor of n that is <= cap."""
    b = max(1, min(n, cap))
    while b > 1 and n % b != 0:
        b -= 1
    return b


def _pick_batch_block(B):
    """Two-way batch split (v7x megacore) when it stays (8,128)-tiling legal."""
    if B >= 16 and B % 2 == 0 and (B // 2) % 8 == 0:
        return B // 2
    return B


def _pick_time_block(T, BB, H4, budget_bytes=16 * 1024 * 1024):
    """Largest time chunk whose double-buffered bf16 gx block fits the budget."""
    cap = max(1, budget_bytes // (BB * H4 * 2 * 2))
    return _pick_block(T, min(cap, 64))


def genetic_model_forward(text_ids, params):
    """text_ids: (B, T) int32 token ids.  Returns logits (B, num_classes) f32."""
    B, T = text_ids.shape
    H = TEXT_LSTM_HIDDEN
    H4 = 4 * H
    C = params["wo"].shape[1]
    CPAD = ((C + LANE - 1) // LANE) * LANE                   # lane-dense logits
    FP = LANE                                                # lane-dense head width

    # Fold W_ih + LSTM bias into the embedding table: one (V,E)@(E,4H) matmul
    # per call instead of a per-chunk (TT*BB,E)@(E,4H), and the streamed tensor
    # becomes the gathered gate pre-activations (bf16).
    emb = params["embedding"].astype(jnp.bfloat16)           # (V, E)
    wih = params["wih_t"].astype(jnp.bfloat16)                # (E, 4H)
    e_proj = (jnp.dot(emb, wih, preferred_element_type=jnp.float32)
              + params["b_lstm"]).astype(jnp.bfloat16)        # (V, 4H)

    BB = _pick_batch_block(B)
    nb = B // BB
    TT = _pick_time_block(T, BB, H4)
    grid = (nb, T // TT)

    # Batch-block outermost id layout -> every (TT, BB, 4H) chunk is a
    # contiguous HBM read.  Only the tiny int32 id matrix is transposed.
    ids_blocked = text_ids.reshape(nb, BB, T).transpose(0, 2, 1)   # (nb, T, BB)
    gx = jnp.take(e_proj, ids_blocked, axis=0)                     # (nb, T, BB, 4H) bf16

    # Zero-padded, lane-dense head weights (padding contributes exact zeros).
    whh = params["whh_t"].astype(jnp.bfloat16)                     # (H, 4H)
    w1 = jnp.zeros((H, FP), jnp.bfloat16).at[:, :FC_HIDDEN].set(
        params["w1"].astype(jnp.bfloat16))
    b1 = jnp.zeros((1, FP), jnp.float32).at[:, :FC_HIDDEN].set(params["b1"])
    w2 = jnp.zeros((FP, FP), jnp.bfloat16).at[:FC_HIDDEN, :FC_HIDDEN2].set(
        params["w2"].astype(jnp.bfloat16))
    b2 = jnp.zeros((1, FP), jnp.float32).at[:, :FC_HIDDEN2].set(params["b2"])
    wo = jnp.zeros((FP, CPAD), jnp.bfloat16).at[:FC_HIDDEN2, :C].set(
        params["wo"].astype(jnp.bfloat16))
    bo = jnp.zeros((1, CPAD), jnp.float32).at[:, :C].set(params["bo"])

    def full(shape):
        return pl.BlockSpec(shape, lambda b, t: (0,) * len(shape))

    out = pl.pallas_call(
        _genetic_kernel,
        out_shape=jax.ShapeDtypeStruct((B, CPAD), jnp.float32),
        grid_spec=pltpu.PrefetchScalarGridSpec(
            num_scalar_prefetch=0,
            grid=grid,
            in_specs=[
                # leading (batch-block) dim squeezed out of the kernel ref
                pl.BlockSpec((None, TT, BB, H4), lambda b, t: (b, t, 0, 0)),
                full((H, H4)),
                full((H, FP)), full((1, FP)),
                full((FP, FP)), full((1, FP)),
                full((FP, CPAD)), full((1, CPAD)),
            ],
            out_specs=pl.BlockSpec((BB, CPAD), lambda b, t: (b, 0)),
            scratch_shapes=[
                pltpu.VMEM((BB, H), jnp.float32),                  # h
                pltpu.VMEM((BB, H), jnp.float32),                  # c
            ],
        ),
        compiler_params=pltpu.CompilerParams(
            dimension_semantics=("parallel", "arbitrary"),
            vmem_limit_bytes=40 * 1024 * 1024,
        ),
    )(gx, whh, w1, b1, w2, b2, wo, bo)

    return out[:, :C]


def init_params(key, vocab_size, num_classes):
    ks = jax.random.split(key, 10)
    H, E = TEXT_LSTM_HIDDEN, EMBEDDING_DIM

    def unif(k, shape, scale):
        return jax.random.uniform(k, shape, jnp.float32, -scale, scale)

    emb = jax.random.normal(ks[0], (vocab_size, E), jnp.float32) * 0.1
    emb = emb.at[0].set(0.0)                                 # padding_idx=0

    s_lstm = 1.0 / jnp.sqrt(H)
    w_ih = unif(ks[1], (4 * H, E), s_lstm)                   # PyTorch layout (4H, E)
    w_hh = unif(ks[2], (4 * H, H), s_lstm)
    b_ih = unif(ks[3], (4 * H,), s_lstm)
    b_hh = unif(ks[4], (4 * H,), s_lstm)

    s1 = 1.0 / jnp.sqrt(H)
    w1 = unif(ks[5], (FC_HIDDEN, H), s1)
    b1 = unif(ks[6], (FC_HIDDEN,), s1)
    s2 = 1.0 / jnp.sqrt(FC_HIDDEN)
    w2 = unif(ks[7], (FC_HIDDEN2, FC_HIDDEN), s2)
    b2 = unif(ks[8], (FC_HIDDEN2,), s2)
    so = 1.0 / jnp.sqrt(FC_HIDDEN2)
    ko1, ko2 = jax.random.split(ks[9])
    wo = unif(ko1, (num_classes, FC_HIDDEN2), so)
    bo = unif(ko2, (num_classes,), so)

    return {
        "embedding": emb,
        "wih_t": w_ih.T,                                     # (E, 4H)
        "whh_t": w_hh.T,                                     # (H, 4H)
        "b_lstm": (b_ih + b_hh).reshape(1, 4 * H),
        "w1": w1.T, "b1": b1.reshape(1, -1),
        "w2": w2.T, "b2": b2.reshape(1, -1),
        "wo": wo.T, "bo": bo.reshape(1, -1),
    }


def _reference_forward(text_ids, params):
    """Pure-JAX reference with the same bf16 operands / f32 accumulation."""
    H = TEXT_LSTM_HIDDEN
    emb = params["embedding"].astype(jnp.bfloat16)
    wih = params["wih_t"].astype(jnp.bfloat16)
    e_proj = (jnp.dot(emb, wih, preferred_element_type=jnp.float32)
              + params["b_lstm"]).astype(jnp.bfloat16)        # (V, 4H)
    gx = jnp.take(e_proj, text_ids, axis=0)                   # (B, T, 4H) bf16
    whh = params["whh_t"].astype(jnp.bfloat16)
    B, T = text_ids.shape
    h = jnp.zeros((B, H), jnp.float32)
    c = jnp.zeros((B, H), jnp.float32)
    for t in range(T):
        gates = (jnp.dot(h.astype(jnp.bfloat16), whh,
                         preferred_element_type=jnp.float32)
                 + gx[:, t, :].astype(jnp.float32))
        i_g = _sigmoid_via_tanh(gates[:, 0 * H:1 * H])
        f_g = _sigmoid_via_tanh(gates[:, 1 * H:2 * H])
        g_g = jnp.tanh(gates[:, 2 * H:3 * H])
        o_g = _sigmoid_via_tanh(gates[:, 3 * H:4 * H])
        c = f_g * c + i_g * g_g
        h = o_g * jnp.tanh(c)
    w1 = params["w1"].astype(jnp.bfloat16)
    w2 = params["w2"].astype(jnp.bfloat16)
    wo = params["wo"].astype(jnp.bfloat16)
    x1 = jnp.maximum(jnp.dot(h.astype(jnp.bfloat16), w1,
                             preferred_element_type=jnp.float32) + params["b1"], 0.0)
    x2 = jnp.maximum(jnp.dot(x1.astype(jnp.bfloat16), w2,
                             preferred_element_type=jnp.float32) + params["b2"], 0.0)
    return jnp.dot(x2.astype(jnp.bfloat16), wo,
                   preferred_element_type=jnp.float32) + params["bo"]


if __name__ == "__main__":
    VOCAB_SIZE = 32
    NUM_CLASSES = 4
    BATCH = 8
    SEQ = 8

    key = jax.random.PRNGKey(0)
    k_param, k_text = jax.random.split(key)
    params = init_params(k_param, VOCAB_SIZE, NUM_CLASSES)
    text = jax.random.randint(k_text, (BATCH, SEQ), 1, VOCAB_SIZE, dtype=jnp.int32)

    logits = genetic_model_forward(text, params)
    jax.block_until_ready(logits)

    ref = _reference_forward(text, params)
    assert logits.shape == (BATCH, NUM_CLASSES)
    assert jnp.allclose(logits, ref, rtol=5e-3, atol=5e-3), (
        float(jnp.max(jnp.abs(logits - ref))))
    print("KERNEL_OK")
</pallas_src>

<mosaic_0001>
module attributes {stable_mosaic.version = 11 : i64} {
  func.func @_genetic_kernel(%arg0: i32, %arg1: i32, %arg2: memref<1x8x8x512xbf16, #tpu.memory_space<vmem>>, %arg3: memref<128x512xbf16, #tpu.memory_space<vmem>>, %arg4: memref<128x128xbf16, #tpu.memory_space<vmem>>, %arg5: memref<1x128xf32, #tpu.memory_space<vmem>>, %arg6: memref<128x128xbf16, #tpu.memory_space<vmem>>, %arg7: memref<1x128xf32, #tpu.memory_space<vmem>>, %arg8: memref<128x128xbf16, #tpu.memory_space<vmem>>, %arg9: memref<1x128xf32, #tpu.memory_space<vmem>>, %arg10: memref<8x128xf32, #tpu.memory_space<vmem>>, %arg11: memref<8x128xf32, #tpu.memory_space<vmem>>, %arg12: memref<8x128xf32, #tpu.memory_space<vmem>>) attributes {dimension_semantics = [#tpu.dimension_semantics<parallel>, #tpu.dimension_semantics<arbitrary>], iteration_bounds = array<i64: 1, 1>, scalar_prefetch = 0 : i64, scratch_operands = 2 : i64, tpu.core_type = #tpu.core_type<tc>, window_params = [{transform_indices = @transform_0, window_bounds = array<i64: 1, 8, 8, 512>}, {pipeline_mode = #tpu.pipeline_mode<synchronous>, transform_indices = @transform_1, window_bounds = array<i64: 128, 512>}, {pipeline_mode = #tpu.pipeline_mode<synchronous>, transform_indices = @transform_2, window_bounds = array<i64: 128, 128>}, {pipeline_mode = #tpu.pipeline_mode<synchronous>, transform_indices = @transform_3, window_bounds = array<i64: 1, 128>}, {pipeline_mode = #tpu.pipeline_mode<synchronous>, transform_indices = @transform_4, window_bounds = array<i64: 128, 128>}, {pipeline_mode = #tpu.pipeline_mode<synchronous>, transform_indices = @transform_5, window_bounds = array<i64: 1, 128>}, {pipeline_mode = #tpu.pipeline_mode<synchronous>, transform_indices = @transform_6, window_bounds = array<i64: 128, 128>}, {pipeline_mode = #tpu.pipeline_mode<synchronous>, transform_indices = @transform_7, window_bounds = array<i64: 1, 128>}, {transform_indices = @transform_8, window_bounds = array<i64: 8, 128>}]} {
    %c0_i32 = arith.constant 0 : i32
    %0 = arith.cmpi eq, %arg1, %c0_i32 : i32
    %1 = arith.extui %0 : i1 to i32
    %c0_i32_0 = arith.constant 0 : i32
    %2 = arith.cmpi ne, %1, %c0_i32_0 : i32
    scf.if %2 {
      %cst_130 = arith.constant 0.000000e+00 : f32
      %322 = vector.broadcast %cst_130 : f32 to vector<8x128xf32>
      %c0_131 = arith.constant 0 : index
      %c0_132 = arith.constant 0 : index
      %323 = vector.load %arg11[%c0_131, %c0_132] : memref<8x128xf32, #tpu.memory_space<vmem>>, vector<8x128xf32>
      tpu.vector_store %arg11[%c0_131, %c0_132], %322 {strides = array<i32>} : memref<8x128xf32, #tpu.memory_space<vmem>>, vector<8x128xf32>,
      %cst_133 = arith.constant 0.000000e+00 : f32
      %324 = vector.broadcast %cst_133 : f32 to vector<8x128xf32>
      %c0_134 = arith.constant 0 : index
      %c0_135 = arith.constant 0 : index
      %325 = vector.load %arg12[%c0_134, %c0_135] : memref<8x128xf32, #tpu.memory_space<vmem>>, vector<8x128xf32>
      tpu.vector_store %arg12[%c0_134, %c0_135], %324 {strides = array<i32>} : memref<8x128xf32, #tpu.memory_space<vmem>>, vector<8x128xf32>,
    } else {
    }
    %c0 = arith.constant 0 : index
    %c0_1 = arith.constant 0 : index
    %3 = vector.load %arg11[%c0, %c0_1] : memref<8x128xf32, #tpu.memory_space<vmem>>, vector<8x128xf32>
    %c0_2 = arith.constant 0 : index
    %c0_3 = arith.constant 0 : index
    %4 = vector.load %arg12[%c0_2, %c0_3] : memref<8x128xf32, #tpu.memory_space<vmem>>, vector<8x128xf32>
    %c0_i32_4 = arith.constant 0 : i32
    %5 = arith.truncf %3 : vector<8x128xf32> to vector<8x128xbf16>
    %c0_5 = arith.constant 0 : index
    %c0_6 = arith.constant 0 : index
    %6 = vector.load %arg3[%c0_5, %c0_6] : memref<128x512xbf16, #tpu.memory_space<vmem>>, vector<128x512xbf16>
    %cst = arith.constant dense<0.000000e+00> : vector<8x512xf32>
    %7 = tpu.matmul %5, %6, %cst {dimension_numbers = #tpu.dot_dimension_numbers<[1], [0], [0], [1], [0, 0, 1, 1], [], []>} : vector<8x128xbf16>, vector<128x512xbf16>, vector<8x512xf32> -> vector<8x512xf32>
    %c0_7 = arith.constant 0 : index
    %8 = arith.index_cast %c0_i32_4 : i32 to index
    %c0_8 = arith.constant 0 : index
    %c0_9 = arith.constant 0 : index
    %9 = vector.load %arg2[%c0_7, %8, %c0_8, %c0_9] : memref<1x8x8x512xbf16, #tpu.memory_space<vmem>>, vector<1x1x8x512xbf16>
    %10 = vector.shape_cast %9 : vector<1x1x8x512xbf16> to vector<8x512xbf16>
    %11 = arith.extf %10 : vector<8x512xbf16> to vector<8x512xf32>
    %12 = arith.addf %7, %11 : vector<8x512xf32>
    %13 = vector.extract_strided_slice %12 {offsets = [0, 0], sizes = [8, 128], strides = [1, 1]} : vector<8x512xf32> to vector<8x128xf32>
    %cst_10 = arith.constant 5.000000e-01 : f32
    %14 = vector.broadcast %cst_10 : f32 to vector<8x128xf32>
    %15 = arith.mulf %14, %13 : vector<8x128xf32>
    %16 = math.tanh %15 : vector<8x128xf32>
    %cst_11 = arith.constant 1.000000e+00 : f32
    %17 = vector.broadcast %cst_11 : f32 to vector<8x128xf32>
    %18 = arith.addf %16, %17 : vector<8x128xf32>
    %cst_12 = arith.constant 5.000000e-01 : f32
    %19 = vector.broadcast %cst_12 : f32 to vector<8x128xf32>
    %20 = arith.mulf %19, %18 : vector<8x128xf32>
    %21 = vector.extract_strided_slice %12 {offsets = [0, 128], sizes = [8, 128], strides = [1, 1]} : vector<8x512xf32> to vector<8x128xf32>
    %cst_13 = arith.constant 5.000000e-01 : f32
    %22 = vector.broadcast %cst_13 : f32 to vector<8x128xf32>
    %23 = arith.mulf %22, %21 : vector<8x128xf32>
    %24 = math.tanh %23 : vector<8x128xf32>
    %cst_14 = arith.constant 1.000000e+00 : f32
    %25 = vector.broadcast %cst_14 : f32 to vector<8x128xf32>
    %26 = arith.addf %24, %25 : vector<8x128xf32>
    %cst_15 = arith.constant 5.000000e-01 : f32
    %27 = vector.broadcast %cst_15 : f32 to vector<8x128xf32>
    %28 = arith.mulf %27, %26 : vector<8x128xf32>
    %29 = vector.extract_strided_slice %12 {offsets = [0, 256], sizes = [8, 128], strides = [1, 1]} : vector<8x512xf32> to vector<8x128xf32>
    %30 = math.tanh %29 : vector<8x128xf32>
    %31 = vector.extract_strided_slice %12 {offsets = [0, 384], sizes = [8, 128], strides = [1, 1]} : vector<8x512xf32> to vector<8x128xf32>
    %cst_16 = arith.constant 5.000000e-01 : f32
    %32 = vector.broadcast %cst_16 : f32 to vector<8x128xf32>
    %33 = arith.mulf %32, %31 : vector<8x128xf32>
    %34 = math.tanh %33 : vector<8x128xf32>
    %cst_17 = arith.constant 1.000000e+00 : f32
    %35 = vector.broadcast %cst_17 : f32 to vector<8x128xf32>
    %36 = arith.addf %34, %35 : vector<8x128xf32>
    %cst_18 = arith.constant 5.000000e-01 : f32
    %37 = vector.broadcast %cst_18 : f32 to vector<8x128xf32>
    %38 = arith.mulf %37, %36 : vector<8x128xf32>
    %39 = arith.mulf %28, %4 : vector<8x128xf32>
    %40 = arith.mulf %20, %30 : vector<8x128xf32>
    %41 = arith.addf %39, %40 : vector<8x128xf32>
    %42 = math.tanh %41 : vector<8x128xf32>
    %43 = arith.mulf %38, %42 : vector<8x128xf32>
    %c1_i32 = arith.constant 1 : i32
    %44 = arith.truncf %43 : vector<8x128xf32> to vector<8x128xbf16>
    %c0_19 = arith.constant 0 : index
    %c0_20 = arith.constant 0 : index
    %45 = vector.load %arg3[%c0_19, %c0_20] : memref<128x512xbf16, #tpu.memory_space<vmem>>, vector<128x512xbf16>
    %cst_21 = arith.constant dense<0.000000e+00> : vector<8x512xf32>
    %46 = tpu.matmul %44, %45, %cst_21 {dimension_numbers = #tpu.dot_dimension_numbers<[1], [0], [0], [1], [0, 0, 1, 1], [], []>} : vector<8x128xbf16>, vector<128x512xbf16>, vector<8x512xf32> -> vector<8x512xf32>
    %c0_22 = arith.constant 0 : index
    %47 = arith.index_cast %c1_i32 : i32 to index
    %c0_23 = arith.constant 0 : index
    %c0_24 = arith.constant 0 : index
    %48 = vector.load %arg2[%c0_22, %47, %c0_23, %c0_24] : memref<1x8x8x512xbf16, #tpu.memory_space<vmem>>, vector<1x1x8x512xbf16>
    %49 = vector.shape_cast %48 : vector<1x1x8x512xbf16> to vector<8x512xbf16>
    %50 = arith.extf %49 : vector<8x512xbf16> to vector<8x512xf32>
    %51 = arith.addf %46, %50 : vector<8x512xf32>
    %52 = vector.extract_strided_slice %51 {offsets = [0, 0], sizes = [8, 128], strides = [1, 1]} : vector<8x512xf32> to vector<8x128xf32>
    %cst_25 = arith.constant 5.000000e-01 : f32
    %53 = vector.broadcast %cst_25 : f32 to vector<8x128xf32>
    %54 = arith.mulf %53, %52 : vector<8x128xf32>
    %55 = math.tanh %54 : vector<8x128xf32>
    %cst_26 = arith.constant 1.000000e+00 : f32
    %56 = vector.broadcast %cst_26 : f32 to vector<8x128xf32>
    %57 = arith.addf %55, %56 : vector<8x128xf32>
    %cst_27 = arith.constant 5.000000e-01 : f32
    %58 = vector.broadcast %cst_27 : f32 to vector<8x128xf32>
    %59 = arith.mulf %58, %57 : vector<8x128xf32>
    %60 = vector.extract_strided_slice %51 {offsets = [0, 128], sizes = [8, 128], strides = [1, 1]} : vector<8x512xf32> to vector<8x128xf32>
    %cst_28 = arith.constant 5.000000e-01 : f32
    %61 = vector.broadcast %cst_28 : f32 to vector<8x128xf32>
    %62 = arith.mulf %61, %60 : vector<8x128xf32>
    %63 = math.tanh %62 : vector<8x128xf32>
    %cst_29 = arith.constant 1.000000e+00 : f32
    %64 = vector.broadcast %cst_29 : f32 to vector<8x128xf32>
    %65 = arith.addf %63, %64 : vector<8x128xf32>
    %cst_30 = arith.constant 5.000000e-01 : f32
    %66 = vector.broadcast %cst_30 : f32 to vector<8x128xf32>
    %67 = arith.mulf %66, %65 : vector<8x128xf32>
    %68 = vector.extract_strided_slice %51 {offsets = [0, 256], sizes = [8, 128], strides = [1, 1]} : vector<8x512xf32> to vector<8x128xf32>
    %69 = math.tanh %68 : vector<8x128xf32>
    %70 = vector.extract_strided_slice %51 {offsets = [0, 384], sizes = [8, 128], strides = [1, 1]} : vector<8x512xf32> to vector<8x128xf32>
    %cst_31 = arith.constant 5.000000e-01 : f32
    %71 = vector.broadcast %cst_31 : f32 to vector<8x128xf32>
    %72 = arith.mulf %71, %70 : vector<8x128xf32>
    %73 = math.tanh %72 : vector<8x128xf32>
    %cst_32 = arith.constant 1.000000e+00 : f32
    %74 = vector.broadcast %cst_32 : f32 to vector<8x128xf32>
    %75 = arith.addf %73, %74 : vector<8x128xf32>
    %cst_33 = arith.constant 5.000000e-01 : f32
    %76 = vector.broadcast %cst_33 : f32 to vector<8x128xf32>
    %77 = arith.mulf %76, %75 : vector<8x128xf32>
    %78 = arith.mulf %67, %41 : vector<8x128xf32>
    %79 = arith.mulf %59, %69 : vector<8x128xf32>
    %80 = arith.addf %78, %79 : vector<8x128xf32>
    %81 = math.tanh %80 : vector<8x128xf32>
    %82 = arith.mulf %77, %81 : vector<8x128xf32>
    %c2_i32 = arith.constant 2 : i32
    %83 = arith.truncf %82 : vector<8x128xf32> to vector<8x128xbf16>
    %c0_34 = arith.constant 0 : index
    %c0_35 = arith.constant 0 : index
    %84 = vector.load %arg3[%c0_34, %c0_35] : memref<128x512xbf16, #tpu.memory_space<vmem>>, vector<128x512xbf16>
    %cst_36 = arith.constant dense<0.000000e+00> : vector<8x512xf32>
    %85 = tpu.matmul %83, %84, %cst_36 {dimension_numbers = #tpu.dot_dimension_numbers<[1], [0], [0], [1], [0, 0, 1, 1], [], []>} : vector<8x128xbf16>, vector<128x512xbf16>, vector<8x512xf32> -> vector<8x512xf32>
    %c0_37 = arith.constant 0 : index
    %86 = arith.index_cast %c2_i32 : i32 to index
    %c0_38 = arith.constant 0 : index
    %c0_39 = arith.constant 0 : index
    %87 = vector.load %arg2[%c0_37, %86, %c0_38, %c0_39] : memref<1x8x8x512xbf16, #tpu.memory_space<vmem>>, vector<1x1x8x512xbf16>
    %88 = vector.shape_cast %87 : vector<1x1x8x512xbf16> to vector<8x512xbf16>
    %89 = arith.extf %88 : vector<8x512xbf16> to vector<8x512xf32>
    %90 = arith.addf %85, %89 : vector<8x512xf32>
    %91 = vector.extract_strided_slice %90 {offsets = [0, 0], sizes = [8, 128], strides = [1, 1]} : vector<8x512xf32> to vector<8x128xf32>
    %cst_40 = arith.constant 5.000000e-01 : f32
    %92 = vector.broadcast %cst_40 : f32 to vector<8x128xf32>
    %93 = arith.mulf %92, %91 : vector<8x128xf32>
    %94 = math.tanh %93 : vector<8x128xf32>
    %cst_41 = arith.constant 1.000000e+00 : f32
    %95 = vector.broadcast %cst_41 : f32 to vector<8x128xf32>
    %96 = arith.addf %94, %95 : vector<8x128xf32>
    %cst_42 = arith.constant 5.000000e-01 : f32
    %97 = vector.broadcast %cst_42 : f32 to vector<8x128xf32>
    %98 = arith.mulf %97, %96 : vector<8x128xf32>
    %99 = vector.extract_strided_slice %90 {offsets = [0, 128], sizes = [8, 128], strides = [1, 1]} : vector<8x512xf32> to vector<8x128xf32>
    %cst_43 = arith.constant 5.000000e-01 : f32
    %100 = vector.broadcast %cst_43 : f32 to vector<8x128xf32>
    %101 = arith.mulf %100, %99 : vector<8x128xf32>
    %102 = math.tanh %101 : vector<8x128xf32>
    %cst_44 = arith.constant 1.000000e+00 : f32
    %103 = vector.broadcast %cst_44 : f32 to vector<8x128xf32>
    %104 = arith.addf %102, %103 : vector<8x128xf32>
    %cst_45 = arith.constant 5.000000e-01 : f32
    %105 = vector.broadcast %cst_45 : f32 to vector<8x128xf32>
    %106 = arith.mulf %105, %104 : vector<8x128xf32>
    %107 = vector.extract_strided_slice %90 {offsets = [0, 256], sizes = [8, 128], strides = [1, 1]} : vector<8x512xf32> to vector<8x128xf32>
    %108 = math.tanh %107 : vector<8x128xf32>
    %109 = vector.extract_strided_slice %90 {offsets = [0, 384], sizes = [8, 128], strides = [1, 1]} : vector<8x512xf32> to vector<8x128xf32>
    %cst_46 = arith.constant 5.000000e-01 : f32
    %110 = vector.broadcast %cst_46 : f32 to vector<8x128xf32>
    %111 = arith.mulf %110, %109 : vector<8x128xf32>
    %112 = math.tanh %111 : vector<8x128xf32>
    %cst_47 = arith.constant 1.000000e+00 : f32
    %113 = vector.broadcast %cst_47 : f32 to vector<8x128xf32>
    %114 = arith.addf %112, %113 : vector<8x128xf32>
    %cst_48 = arith.constant 5.000000e-01 : f32
    %115 = vector.broadcast %cst_48 : f32 to vector<8x128xf32>
    %116 = arith.mulf %115, %114 : vector<8x128xf32>
    %117 = arith.mulf %106, %80 : vector<8x128xf32>
    %118 = arith.mulf %98, %108 : vector<8x128xf32>
    %119 = arith.addf %117, %118 : vector<8x128xf32>
    %120 = math.tanh %119 : vector<8x128xf32>
    %121 = arith.mulf %116, %120 : vector<8x128xf32>
    %c3_i32 = arith.constant 3 : i32
    %122 = arith.truncf %121 : vector<8x128xf32> to vector<8x128xbf16>
    %c0_49 = arith.constant 0 : index
    %c0_50 = arith.constant 0 : index
    %123 = vector.load %arg3[%c0_49, %c0_50] : memref<128x512xbf16, #tpu.memory_space<vmem>>, vector<128x512xbf16>
    %cst_51 = arith.constant dense<0.000000e+00> : vector<8x512xf32>
    %124 = tpu.matmul %122, %123, %cst_51 {dimension_numbers = #tpu.dot_dimension_numbers<[1], [0], [0], [1], [0, 0, 1, 1], [], []>} : vector<8x128xbf16>, vector<128x512xbf16>, vector<8x512xf32> -> vector<8x512xf32>
    %c0_52 = arith.constant 0 : index
    %125 = arith.index_cast %c3_i32 : i32 to index
    %c0_53 = arith.constant 0 : index
    %c0_54 = arith.constant 0 : index
    %126 = vector.load %arg2[%c0_52, %125, %c0_53, %c0_54] : memref<1x8x8x512xbf16, #tpu.memory_space<vmem>>, vector<1x1x8x512xbf16>
    %127 = vector.shape_cast %126 : vector<1x1x8x512xbf16> to vector<8x512xbf16>
    %128 = arith.extf %127 : vector<8x512xbf16> to vector<8x512xf32>
    %129 = arith.addf %124, %128 : vector<8x512xf32>
    %130 = vector.extract_strided_slice %129 {offsets = [0, 0], sizes = [8, 128], strides = [1, 1]} : vector<8x512xf32> to vector<8x128xf32>
    %cst_55 = arith.constant 5.000000e-01 : f32
    %131 = vector.broadcast %cst_55 : f32 to vector<8x128xf32>
    %132 = arith.mulf %131, %130 : vector<8x128xf32>
    %133 = math.tanh %132 : vector<8x128xf32>
    %cst_56 = arith.constant 1.000000e+00 : f32
    %134 = vector.broadcast %cst_56 : f32 to vector<8x128xf32>
    %135 = arith.addf %133, %134 : vector<8x128xf32>
    %cst_57 = arith.constant 5.000000e-01 : f32
    %136 = vector.broadcast %cst_57 : f32 to vector<8x128xf32>
    %137 = arith.mulf %136, %135 : vector<8x128xf32>
    %138 = vector.extract_strided_slice %129 {offsets = [0, 128], sizes = [8, 128], strides = [1, 1]} : vector<8x512xf32> to vector<8x128xf32>
    %cst_58 = arith.constant 5.000000e-01 : f32
    %139 = vector.broadcast %cst_58 : f32 to vector<8x128xf32>
    %140 = arith.mulf %139, %138 : vector<8x128xf32>
    %141 = math.tanh %140 : vector<8x128xf32>
    %cst_59 = arith.constant 1.000000e+00 : f32
    %142 = vector.broadcast %cst_59 : f32 to vector<8x128xf32>
    %143 = arith.addf %141, %142 : vector<8x128xf32>
    %cst_60 = arith.constant 5.000000e-01 : f32
    %144 = vector.broadcast %cst_60 : f32 to vector<8x128xf32>
    %145 = arith.mulf %144, %143 : vector<8x128xf32>
    %146 = vector.extract_strided_slice %129 {offsets = [0, 256], sizes = [8, 128], strides = [1, 1]} : vector<8x512xf32> to vector<8x128xf32>
    %147 = math.tanh %146 : vector<8x128xf32>
    %148 = vector.extract_strided_slice %129 {offsets = [0, 384], sizes = [8, 128], strides = [1, 1]} : vector<8x512xf32> to vector<8x128xf32>
    %cst_61 = arith.constant 5.000000e-01 : f32
    %149 = vector.broadcast %cst_61 : f32 to vector<8x128xf32>
    %150 = arith.mulf %149, %148 : vector<8x128xf32>
    %151 = math.tanh %150 : vector<8x128xf32>
    %cst_62 = arith.constant 1.000000e+00 : f32
    %152 = vector.broadcast %cst_62 : f32 to vector<8x128xf32>
    %153 = arith.addf %151, %152 : vector<8x128xf32>
    %cst_63 = arith.constant 5.000000e-01 : f32
    %154 = vector.broadcast %cst_63 : f32 to vector<8x128xf32>
    %155 = arith.mulf %154, %153 : vector<8x128xf32>
    %156 = arith.mulf %145, %119 : vector<8x128xf32>
    %157 = arith.mulf %137, %147 : vector<8x128xf32>
    %158 = arith.addf %156, %157 : vector<8x128xf32>
    %159 = math.tanh %158 : vector<8x128xf32>
    %160 = arith.mulf %155, %159 : vector<8x128xf32>
    %c4_i32 = arith.constant 4 : i32
    %161 = arith.truncf %160 : vector<8x128xf32> to vector<8x128xbf16>
    %c0_64 = arith.constant 0 : index
    %c0_65 = arith.constant 0 : index
    %162 = vector.load %arg3[%c0_64, %c0_65] : memref<128x512xbf16, #tpu.memory_space<vmem>>, vector<128x512xbf16>
    %cst_66 = arith.constant dense<0.000000e+00> : vector<8x512xf32>
    %163 = tpu.matmul %161, %162, %cst_66 {dimension_numbers = #tpu.dot_dimension_numbers<[1], [0], [0], [1], [0, 0, 1, 1], [], []>} : vector<8x128xbf16>, vector<128x512xbf16>, vector<8x512xf32> -> vector<8x512xf32>
    %c0_67 = arith.constant 0 : index
    %164 = arith.index_cast %c4_i32 : i32 to index
    %c0_68 = arith.constant 0 : index
    %c0_69 = arith.constant 0 : index
    %165 = vector.load %arg2[%c0_67, %164, %c0_68, %c0_69] : memref<1x8x8x512xbf16, #tpu.memory_space<vmem>>, vector<1x1x8x512xbf16>
    %166 = vector.shape_cast %165 : vector<1x1x8x512xbf16> to vector<8x512xbf16>
    %167 = arith.extf %166 : vector<8x512xbf16> to vector<8x512xf32>
    %168 = arith.addf %163, %167 : vector<8x512xf32>
    %169 = vector.extract_strided_slice %168 {offsets = [0, 0], sizes = [8, 128], strides = [1, 1]} : vector<8x512xf32> to vector<8x128xf32>
    %cst_70 = arith.constant 5.000000e-01 : f32
    %170 = vector.broadcast %cst_70 : f32 to vector<8x128xf32>
    %171 = arith.mulf %170, %169 : vector<8x128xf32>
    %172 = math.tanh %171 : vector<8x128xf32>
    %cst_71 = arith.constant 1.000000e+00 : f32
    %173 = vector.broadcast %cst_71 : f32 to vector<8x128xf32>
    %174 = arith.addf %172, %173 : vector<8x128xf32>
    %cst_72 = arith.constant 5.000000e-01 : f32
    %175 = vector.broadcast %cst_72 : f32 to vector<8x128xf32>
    %176 = arith.mulf %175, %174 : vector<8x128xf32>
    %177 = vector.extract_strided_slice %168 {offsets = [0, 128], sizes = [8, 128], strides = [1, 1]} : vector<8x512xf32> to vector<8x128xf32>
    %cst_73 = arith.constant 5.000000e-01 : f32
    %178 = vector.broadcast %cst_73 : f32 to vector<8x128xf32>
    %179 = arith.mulf %178, %177 : vector<8x128xf32>
    %180 = math.tanh %179 : vector<8x128xf32>
    %cst_74 = arith.constant 1.000000e+00 : f32
    %181 = vector.broadcast %cst_74 : f32 to vector<8x128xf32>
    %182 = arith.addf %180, %181 : vector<8x128xf32>
    %cst_75 = arith.constant 5.000000e-01 : f32
    %183 = vector.broadcast %cst_75 : f32 to vector<8x128xf32>
    %184 = arith.mulf %183, %182 : vector<8x128xf32>
    %185 = vector.extract_strided_slice %168 {offsets = [0, 256], sizes = [8, 128], strides = [1, 1]} : vector<8x512xf32> to vector<8x128xf32>
    %186 = math.tanh %185 : vector<8x128xf32>
    %187 = vector.extract_strided_slice %168 {offsets = [0, 384], sizes = [8, 128], strides = [1, 1]} : vector<8x512xf32> to vector<8x128xf32>
    %cst_76 = arith.constant 5.000000e-01 : f32
    %188 = vector.broadcast %cst_76 : f32 to vector<8x128xf32>
    %189 = arith.mulf %188, %187 : vector<8x128xf32>
    %190 = math.tanh %189 : vector<8x128xf32>
    %cst_77 = arith.constant 1.000000e+00 : f32
    %191 = vector.broadcast %cst_77 : f32 to vector<8x128xf32>
    %192 = arith.addf %190, %191 : vector<8x128xf32>
    %cst_78 = arith.constant 5.000000e-01 : f32
    %193 = vector.broadcast %cst_78 : f32 to vector<8x128xf32>
    %194 = arith.mulf %193, %192 : vector<8x128xf32>
    %195 = arith.mulf %184, %158 : vector<8x128xf32>
    %196 = arith.mulf %176, %186 : vector<8x128xf32>
    %197 = arith.addf %195, %196 : vector<8x128xf32>
    %198 = math.tanh %197 : vector<8x128xf32>
    %199 = arith.mulf %194, %198 : vector<8x128xf32>
    %c5_i32 = arith.constant 5 : i32
    %200 = arith.truncf %199 : vector<8x128xf32> to vector<8x128xbf16>
    %c0_79 = arith.constant 0 : index
    %c0_80 = arith.constant 0 : index
    %201 = vector.load %arg3[%c0_79, %c0_80] : memref<128x512xbf16, #tpu.memory_space<vmem>>, vector<128x512xbf16>
    %cst_81 = arith.constant dense<0.000000e+00> : vector<8x512xf32>
    %202 = tpu.matmul %200, %201, %cst_81 {dimension_numbers = #tpu.dot_dimension_numbers<[1], [0], [0], [1], [0, 0, 1, 1], [], []>} : vector<8x128xbf16>, vector<128x512xbf16>, vector<8x512xf32> -> vector<8x512xf32>
    %c0_82 = arith.constant 0 : index
    %203 = arith.index_cast %c5_i32 : i32 to index
    %c0_83 = arith.constant 0 : index
    %c0_84 = arith.constant 0 : index
    %204 = vector.load %arg2[%c0_82, %203, %c0_83, %c0_84] : memref<1x8x8x512xbf16, #tpu.memory_space<vmem>>, vector<1x1x8x512xbf16>
    %205 = vector.shape_cast %204 : vector<1x1x8x512xbf16> to vector<8x512xbf16>
    %206 = arith.extf %205 : vector<8x512xbf16> to vector<8x512xf32>
    %207 = arith.addf %202, %206 : vector<8x512xf32>
    %208 = vector.extract_strided_slice %207 {offsets = [0, 0], sizes = [8, 128], strides = [1, 1]} : vector<8x512xf32> to vector<8x128xf32>
    %cst_85 = arith.constant 5.000000e-01 : f32
    %209 = vector.broadcast %cst_85 : f32 to vector<8x128xf32>
    %210 = arith.mulf %209, %208 : vector<8x128xf32>
    %211 = math.tanh %210 : vector<8x128xf32>
    %cst_86 = arith.constant 1.000000e+00 : f32
    %212 = vector.broadcast %cst_86 : f32 to vector<8x128xf32>
    %213 = arith.addf %211, %212 : vector<8x128xf32>
    %cst_87 = arith.constant 5.000000e-01 : f32
    %214 = vector.broadcast %cst_87 : f32 to vector<8x128xf32>
    %215 = arith.mulf %214, %213 : vector<8x128xf32>
    %216 = vector.extract_strided_slice %207 {offsets = [0, 128], sizes = [8, 128], strides = [1, 1]} : vector<8x512xf32> to vector<8x128xf32>
    %cst_88 = arith.constant 5.000000e-01 : f32
    %217 = vector.broadcast %cst_88 : f32 to vector<8x128xf32>
    %218 = arith.mulf %217, %216 : vector<8x128xf32>
    %219 = math.tanh %218 : vector<8x128xf32>
    %cst_89 = arith.constant 1.000000e+00 : f32
    %220 = vector.broadcast %cst_89 : f32 to vector<8x128xf32>
    %221 = arith.addf %219, %220 : vector<8x128xf32>
    %cst_90 = arith.constant 5.000000e-01 : f32
    %222 = vector.broadcast %cst_90 : f32 to vector<8x128xf32>
    %223 = arith.mulf %222, %221 : vector<8x128xf32>
    %224 = vector.extract_strided_slice %207 {offsets = [0, 256], sizes = [8, 128], strides = [1, 1]} : vector<8x512xf32> to vector<8x128xf32>
    %225 = math.tanh %224 : vector<8x128xf32>
    %226 = vector.extract_strided_slice %207 {offsets = [0, 384], sizes = [8, 128], strides = [1, 1]} : vector<8x512xf32> to vector<8x128xf32>
    %cst_91 = arith.constant 5.000000e-01 : f32
    %227 = vector.broadcast %cst_91 : f32 to vector<8x128xf32>
    %228 = arith.mulf %227, %226 : vector<8x128xf32>
    %229 = math.tanh %228 : vector<8x128xf32>
    %cst_92 = arith.constant 1.000000e+00 : f32
    %230 = vector.broadcast %cst_92 : f32 to vector<8x128xf32>
    %231 = arith.addf %229, %230 : vector<8x128xf32>
    %cst_93 = arith.constant 5.000000e-01 : f32
    %232 = vector.broadcast %cst_93 : f32 to vector<8x128xf32>
    %233 = arith.mulf %232, %231 : vector<8x128xf32>
    %234 = arith.mulf %223, %197 : vector<8x128xf32>
    %235 = arith.mulf %215, %225 : vector<8x128xf32>
    %236 = arith.addf %234, %235 : vector<8x128xf32>
    %237 = math.tanh %236 : vector<8x128xf32>
    %238 = arith.mulf %233, %237 : vector<8x128xf32>
    %c6_i32 = arith.constant 6 : i32
    %239 = arith.truncf %238 : vector<8x128xf32> to vector<8x128xbf16>
    %c0_94 = arith.constant 0 : index
    %c0_95 = arith.constant 0 : index
    %240 = vector.load %arg3[%c0_94, %c0_95] : memref<128x512xbf16, #tpu.memory_space<vmem>>, vector<128x512xbf16>
    %cst_96 = arith.constant dense<0.000000e+00> : vector<8x512xf32>
    %241 = tpu.matmul %239, %240, %cst_96 {dimension_numbers = #tpu.dot_dimension_numbers<[1], [0], [0], [1], [0, 0, 1, 1], [], []>} : vector<8x128xbf16>, vector<128x512xbf16>, vector<8x512xf32> -> vector<8x512xf32>
    %c0_97 = arith.constant 0 : index
    %242 = arith.index_cast %c6_i32 : i32 to index
    %c0_98 = arith.constant 0 : index
    %c0_99 = arith.constant 0 : index
    %243 = vector.load %arg2[%c0_97, %242, %c0_98, %c0_99] : memref<1x8x8x512xbf16, #tpu.memory_space<vmem>>, vector<1x1x8x512xbf16>
    %244 = vector.shape_cast %243 : vector<1x1x8x512xbf16> to vector<8x512xbf16>
    %245 = arith.extf %244 : vector<8x512xbf16> to vector<8x512xf32>
    %246 = arith.addf %241, %245 : vector<8x512xf32>
    %247 = vector.extract_strided_slice %246 {offsets = [0, 0], sizes = [8, 128], strides = [1, 1]} : vector<8x512xf32> to vector<8x128xf32>
    %cst_100 = arith.constant 5.000000e-01 : f32
    %248 = vector.broadcast %cst_100 : f32 to vector<8x128xf32>
    %249 = arith.mulf %248, %247 : vector<8x128xf32>
    %250 = math.tanh %249 : vector<8x128xf32>
    %cst_101 = arith.constant 1.000000e+00 : f32
    %251 = vector.broadcast %cst_101 : f32 to vector<8x128xf32>
    %252 = arith.addf %250, %251 : vector<8x128xf32>
    %cst_102 = arith.constant 5.000000e-01 : f32
    %253 = vector.broadcast %cst_102 : f32 to vector<8x128xf32>
    %254 = arith.mulf %253, %252 : vector<8x128xf32>
    %255 = vector.extract_strided_slice %246 {offsets = [0, 128], sizes = [8, 128], strides = [1, 1]} : vector<8x512xf32> to vector<8x128xf32>
    %cst_103 = arith.constant 5.000000e-01 : f32
    %256 = vector.broadcast %cst_103 : f32 to vector<8x128xf32>
    %257 = arith.mulf %256, %255 : vector<8x128xf32>
    %258 = math.tanh %257 : vector<8x128xf32>
    %cst_104 = arith.constant 1.000000e+00 : f32
    %259 = vector.broadcast %cst_104 : f32 to vector<8x128xf32>
    %260 = arith.addf %258, %259 : vector<8x128xf32>
    %cst_105 = arith.constant 5.000000e-01 : f32
    %261 = vector.broadcast %cst_105 : f32 to vector<8x128xf32>
    %262 = arith.mulf %261, %260 : vector<8x128xf32>
    %263 = vector.extract_strided_slice %246 {offsets = [0, 256], sizes = [8, 128], strides = [1, 1]} : vector<8x512xf32> to vector<8x128xf32>
    %264 = math.tanh %263 : vector<8x128xf32>
    %265 = vector.extract_strided_slice %246 {offsets = [0, 384], sizes = [8, 128], strides = [1, 1]} : vector<8x512xf32> to vector<8x128xf32>
    %cst_106 = arith.constant 5.000000e-01 : f32
    %266 = vector.broadcast %cst_106 : f32 to vector<8x128xf32>
    %267 = arith.mulf %266, %265 : vector<8x128xf32>
    %268 = math.tanh %267 : vector<8x128xf32>
    %cst_107 = arith.constant 1.000000e+00 : f32
    %269 = vector.broadcast %cst_107 : f32 to vector<8x128xf32>
    %270 = arith.addf %268, %269 : vector<8x128xf32>
    %cst_108 = arith.constant 5.000000e-01 : f32
    %271 = vector.broadcast %cst_108 : f32 to vector<8x128xf32>
    %272 = arith.mulf %271, %270 : vector<8x128xf32>
    %273 = arith.mulf %262, %236 : vector<8x128xf32>
    %274 = arith.mulf %254, %264 : vector<8x128xf32>
    %275 = arith.addf %273, %274 : vector<8x128xf32>
    %276 = math.tanh %275 : vector<8x128xf32>
    %277 = arith.mulf %272, %276 : vector<8x128xf32>
    %c7_i32 = arith.constant 7 : i32
    %278 = arith.truncf %277 : vector<8x128xf32> to vector<8x128xbf16>
    %c0_109 = arith.constant 0 : index
    %c0_110 = arith.constant 0 : index
    %279 = vector.load %arg3[%c0_109, %c0_110] : memref<128x512xbf16, #tpu.memory_space<vmem>>, vector<128x512xbf16>
    %cst_111 = arith.constant dense<0.000000e+00> : vector<8x512xf32>
    %280 = tpu.matmul %278, %279, %cst_111 {dimension_numbers = #tpu.dot_dimension_numbers<[1], [0], [0], [1], [0, 0, 1, 1], [], []>} : vector<8x128xbf16>, vector<128x512xbf16>, vector<8x512xf32> -> vector<8x512xf32>
    %c0_112 = arith.constant 0 : index
    %281 = arith.index_cast %c7_i32 : i32 to index
    %c0_113 = arith.constant 0 : index
    %c0_114 = arith.constant 0 : index
    %282 = vector.load %arg2[%c0_112, %281, %c0_113, %c0_114] : memref<1x8x8x512xbf16, #tpu.memory_space<vmem>>, vector<1x1x8x512xbf16>
    %283 = vector.shape_cast %282 : vector<1x1x8x512xbf16> to vector<8x512xbf16>
    %284 = arith.extf %283 : vector<8x512xbf16> to vector<8x512xf32>
    %285 = arith.addf %280, %284 : vector<8x512xf32>
    %286 = vector.extract_strided_slice %285 {offsets = [0, 0], sizes = [8, 128], strides = [1, 1]} : vector<8x512xf32> to vector<8x128xf32>
    %cst_115 = arith.constant 5.000000e-01 : f32
    %287 = vector.broadcast %cst_115 : f32 to vector<8x128xf32>
    %288 = arith.mulf %287, %286 : vector<8x128xf32>
    %289 = math.tanh %288 : vector<8x128xf32>
    %cst_116 = arith.constant 1.000000e+00 : f32
    %290 = vector.broadcast %cst_116 : f32 to vector<8x128xf32>
    %291 = arith.addf %289, %290 : vector<8x128xf32>
    %cst_117 = arith.constant 5.000000e-01 : f32
    %292 = vector.broadcast %cst_117 : f32 to vector<8x128xf32>
    %293 = arith.mulf %292, %291 : vector<8x128xf32>
    %294 = vector.extract_strided_slice %285 {offsets = [0, 128], sizes = [8, 128], strides = [1, 1]} : vector<8x512xf32> to vector<8x128xf32>
    %cst_118 = arith.constant 5.000000e-01 : f32
    %295 = vector.broadcast %cst_118 : f32 to vector<8x128xf32>
    %296 = arith.mulf %295, %294 : vector<8x128xf32>
    %297 = math.tanh %296 : vector<8x128xf32>
    %cst_119 = arith.constant 1.000000e+00 : f32
    %298 = vector.broadcast %cst_119 : f32 to vector<8x128xf32>
    %299 = arith.addf %297, %298 : vector<8x128xf32>
    %cst_120 = arith.constant 5.000000e-01 : f32
    %300 = vector.broadcast %cst_120 : f32 to vector<8x128xf32>
    %301 = arith.mulf %300, %299 : vector<8x128xf32>
    %302 = vector.extract_strided_slice %285 {offsets = [0, 256], sizes = [8, 128], strides = [1, 1]} : vector<8x512xf32> to vector<8x128xf32>
    %303 = math.tanh %302 : vector<8x128xf32>
    %304 = vector.extract_strided_slice %285 {offsets = [0, 384], sizes = [8, 128], strides = [1, 1]} : vector<8x512xf32> to vector<8x128xf32>
    %cst_121 = arith.constant 5.000000e-01 : f32
    %305 = vector.broadcast %cst_121 : f32 to vector<8x128xf32>
    %306 = arith.mulf %305, %304 : vector<8x128xf32>
    %307 = math.tanh %306 : vector<8x128xf32>
    %cst_122 = arith.constant 1.000000e+00 : f32
    %308 = vector.broadcast %cst_122 : f32 to vector<8x128xf32>
    %309 = arith.addf %307, %308 : vector<8x128xf32>
    %cst_123 = arith.constant 5.000000e-01 : f32
    %310 = vector.broadcast %cst_123 : f32 to vector<8x128xf32>
    %311 = arith.mulf %310, %309 : vector<8x128xf32>
    %312 = arith.mulf %301, %275 : vector<8x128xf32>
    %313 = arith.mulf %293, %303 : vector<8x128xf32>
    %314 = arith.addf %312, %313 : vector<8x128xf32>
    %315 = math.tanh %314 : vector<8x128xf32>
    %316 = arith.mulf %311, %315 : vector<8x128xf32>
    %c8_i32 = arith.constant 8 : i32
    %c0_124 = arith.constant 0 : index
    %c0_125 = arith.constant 0 : index
    %317 = vector.load %arg11[%c0_124, %c0_125] : memref<8x128xf32, #tpu.memory_space<vmem>>, vector<8x128xf32>
    tpu.vector_store %arg11[%c0_124, %c0_125], %316 {strides = array<i32>} : memref<8x128xf32, #tpu.memory_space<vmem>>, vector<8x128xf32>,
    %c0_126 = arith.constant 0 : index
    %c0_127 = arith.constant 0 : index
    %318 = vector.load %arg12[%c0_126, %c0_127] : memref<8x128xf32, #tpu.memory_space<vmem>>, vector<8x128xf32>
    tpu.vector_store %arg12[%c0_126, %c0_127], %314 {strides = array<i32>} : memref<8x128xf32, #tpu.memory_space<vmem>>, vector<8x128xf32>,
    %c0_i32_128 = arith.constant 0 : i32
    %319 = arith.cmpi eq, %arg1, %c0_i32_128 : i32
    %320 = arith.extui %319 : i1 to i32
    %c0_i32_129 = arith.constant 0 : i32
    %321 = arith.cmpi ne, %320, %c0_i32_129 : i32
    scf.if %321 {
      %322 = arith.truncf %316 : vector<8x128xf32> to vector<8x128xbf16>
      %c0_130 = arith.constant 0 : index
      %c0_131 = arith.constant 0 : index
      %323 = vector.load %arg4[%c0_130, %c0_131] : memref<128x128xbf16, #tpu.memory_space<vmem>>, vector<128x128xbf16>
      %cst_132 = arith.constant dense<0.000000e+00> : vector<8x128xf32>
      %324 = tpu.matmul %322, %323, %cst_132 {dimension_numbers = #tpu.dot_dimension_numbers<[1], [0], [0], [1], [0, 0, 1, 1], [], []>} : vector<8x128xbf16>, vector<128x128xbf16>, vector<8x128xf32> -> vector<8x128xf32>
      %c0_133 = arith.constant 0 : index
      %c0_134 = arith.constant 0 : index
      %325 = vector.load %arg5[%c0_133, %c0_134] : memref<1x128xf32, #tpu.memory_space<vmem>>, vector<1x128xf32>
      %326 = vector.broadcast %325 : vector<1x128xf32> to vector<8x128xf32>
      %327 = arith.addf %324, %326 : vector<8x128xf32>
      %cst_135 = arith.constant 0.000000e+00 : f32
      %328 = vector.broadcast %cst_135 : f32 to vector<8x128xf32>
      %329 = arith.maximumf %327, %328 : vector<8x128xf32>
      %330 = arith.truncf %329 : vector<8x128xf32> to vector<8x128xbf16>
      %c0_136 = arith.constant 0 : index
      %c0_137 = arith.constant 0 : index
      %331 = vector.load %arg6[%c0_136, %c0_137] : memref<128x128xbf16, #tpu.memory_space<vmem>>, vector<128x128xbf16>
      %cst_138 = arith.constant dense<0.000000e+00> : vector<8x128xf32>
      %332 = tpu.matmul %330, %331, %cst_138 {dimension_numbers = #tpu.dot_dimension_numbers<[1], [0], [0], [1], [0, 0, 1, 1], [], []>} : vector<8x128xbf16>, vector<128x128xbf16>, vector<8x128xf32> -> vector<8x128xf32>
      %c0_139 = arith.constant 0 : index
      %c0_140 = arith.constant 0 : index
      %333 = vector.load %arg7[%c0_139, %c0_140] : memref<1x128xf32, #tpu.memory_space<vmem>>, vector<1x128xf32>
      %334 = vector.broadcast %333 : vector<1x128xf32> to vector<8x128xf32>
      %335 = arith.addf %332, %334 : vector<8x128xf32>
      %cst_141 = arith.constant 0.000000e+00 : f32
      %336 = vector.broadcast %cst_141 : f32 to vector<8x128xf32>
      %337 = arith.maximumf %335, %336 : vector<8x128xf32>
      %338 = arith.truncf %337 : vector<8x128xf32> to vector<8x128xbf16>
      %c0_142 = arith.constant 0 : index
      %c0_143 = arith.constant 0 : index
      %339 = vector.load %arg8[%c0_142, %c0_143] : memref<128x128xbf16, #tpu.memory_space<vmem>>, vector<128x128xbf16>
      %cst_144 = arith.constant dense<0.000000e+00> : vector<8x128xf32>
      %340 = tpu.matmul %338, %339, %cst_144 {dimension_numbers = #tpu.dot_dimension_numbers<[1], [0], [0], [1], [0, 0, 1, 1], [], []>} : vector<8x128xbf16>, vector<128x128xbf16>, vector<8x128xf32> -> vector<8x128xf32>
      %c0_145 = arith.constant 0 : index
      %c0_146 = arith.constant 0 : index
      %341 = vector.load %arg9[%c0_145, %c0_146] : memref<1x128xf32, #tpu.memory_space<vmem>>, vector<1x128xf32>
      %342 = vector.broadcast %341 : vector<1x128xf32> to vector<8x128xf32>
      %343 = arith.addf %340, %342 : vector<8x128xf32>
      %c0_147 = arith.constant 0 : index
      %c0_148 = arith.constant 0 : index
      %344 = vector.load %arg10[%c0_147, %c0_148] : memref<8x128xf32, #tpu.memory_space<vmem>>, vector<8x128xf32>
      tpu.vector_store %arg10[%c0_147, %c0_148], %343 {strides = array<i32>} : memref<8x128xf32, #tpu.memory_space<vmem>>, vector<8x128xf32>,
    } else {
    }
    return
  }
  func.func @transform_0(%arg0: i32, %arg1: i32) -> (i32, i32, i32, i32) {
    %c0_i32 = arith.constant 0 : i32
    %c0_i32_0 = arith.constant 0 : i32
    %c0_i32_1 = arith.constant 0 : i32
    return %arg0, %arg1, %c0_i32, %c0_i32_0 : i32, i32, i32, i32
  }
  func.func @transform_1(%arg0: i32, %arg1: i32) -> (i32, i32) {
    %c0_i32 = arith.constant 0 : i32
    %c0_i32_0 = arith.constant 0 : i32
    %c0_i32_1 = arith.constant 0 : i32
    return %c0_i32, %c0_i32_0 : i32, i32
  }
  func.func @transform_2(%arg0: i32, %arg1: i32) -> (i32, i32) {
    %c0_i32 = arith.constant 0 : i32
    %c0_i32_0 = arith.constant 0 : i32
    %c0_i32_1 = arith.constant 0 : i32
    return %c0_i32, %c0_i32_0 : i32, i32
  }
  func.func @transform_3(%arg0: i32, %arg1: i32) -> (i32, i32) {
    %c0_i32 = arith.constant 0 : i32
    %c0_i32_0 = arith.constant 0 : i32
    %c0_i32_1 = arith.constant 0 : i32
    return %c0_i32, %c0_i32_0 : i32, i32
  }
  func.func @transform_4(%arg0: i32, %arg1: i32) -> (i32, i32) {
    %c0_i32 = arith.constant 0 : i32
    %c0_i32_0 = arith.constant 0 : i32
    %c0_i32_1 = arith.constant 0 : i32
    return %c0_i32, %c0_i32_0 : i32, i32
  }
  func.func @transform_5(%arg0: i32, %arg1: i32) -> (i32, i32) {
    %c0_i32 = arith.constant 0 : i32
    %c0_i32_0 = arith.constant 0 : i32
    %c0_i32_1 = arith.constant 0 : i32
    return %c0_i32, %c0_i32_0 : i32, i32
  }
  func.func @transform_6(%arg0: i32, %arg1: i32) -> (i32, i32) {
    %c0_i32 = arith.constant 0 : i32
    %c0_i32_0 = arith.constant 0 : i32
    %c0_i32_1 = arith.constant 0 : i32
    return %c0_i32, %c0_i32_0 : i32, i32
  }
  func.func @transform_7(%arg0: i32, %arg1: i32) -> (i32, i32) {
    %c0_i32 = arith.constant 0 : i32
    %c0_i32_0 = arith.constant 0 : i32
    %c0_i32_1 = arith.constant 0 : i32
    return %c0_i32, %c0_i32_0 : i32, i32
  }
  func.func @transform_8(%arg0: i32, %arg1: i32) -> (i32, i32) {
    %c0_i32 = arith.constant 0 : i32
    %c0_i32_0 = arith.constant 0 : i32
    return %arg0, %c0_i32 : i32, i32
  }
}

</mosaic_0001>

<llo_original>
// kernel: tpu_custom_call.1
$region0: #{tpu_custom_call.1}
  #allocation0 [shape = 'u32[]', space=smem, size = 0x4, offset = 0x4, fixed_abs, tag = 'smem constant byte address 0x4 - core index']
  #allocation1 [shape = 'u32[144,128]{1,0:T(1,128)}', space=vmem, size = 0x12000, scoped, tag = 'internal scratch']
  #allocation2 [shape = 'f32[8,128]{1,0:T(8,128)}', space=vmem, size = 0x1000, scoped, tag = 'scratch operand']
  #allocation3 [shape = 'f32[8,128]{1,0:T(8,128)}', space=vmem, size = 0x1000, scoped, tag = 'scratch operand']
  %s0 = inlined_call_operand.hbm [shape: bf16[1,8,8,512], index: 0, kind: input, shape index: {}]
  %s1 = inlined_call_operand.hbm [shape: bf16[128,512], index: 1, kind: input, shape index: {}]
  %s2 = inlined_call_operand.hbm [shape: bf16[128,128], index: 2, kind: input, shape index: {}]
  %s3 = inlined_call_operand.vmem [shape: f32[1,128], index: 3, kind: input, shape index: {}]
  %s4 = inlined_call_operand.hbm [shape: bf16[128,128], index: 4, kind: input, shape index: {}]
  %s5 = inlined_call_operand.vmem [shape: f32[1,128], index: 5, kind: input, shape index: {}]
  %s6 = inlined_call_operand.hbm [shape: bf16[128,128], index: 6, kind: input, shape index: {}]
  %s7 = inlined_call_operand.vmem [shape: f32[1,128], index: 7, kind: input, shape index: {}]
  %s8 = inlined_call_operand.hbm [shape: f32[8,128], index: 8, kind: output, shape index: {}]
  %s9 = sld [smem:[#allocation0]]
  $region70: #{tpu_custom_call.1} parent=0
    _
  %s11 = ssub.s32 1, %s9
  %s12 = scalar_select 0, %s11, %s9
  $region1: #{tpu_custom_call.1} parent=0
    #allocation4 [shape = 'u8[65536]{0}', space=vmem, size = 0x10000, scoped, tag = 'input window, operand 0, single buffered']
    #allocation5 [shape = 's32[1]{0}', space=sflag, size = 0x4, scoped, tag = 'scoped memory for tpu_custom_call.1']
    #allocation6 [shape = 's32[1]{0}', space=sflag, size = 0x4, scoped, tag = 'scoped memory for tpu_custom_call.1']
    #allocation7 [shape = 'u8[131072]{0}', space=vmem, size = 0x20000, scoped, tag = 'input window, operand 1, single buffered']
    #allocation8 [shape = 's32[1]{0}', space=sflag, size = 0x4, scoped, tag = 'scoped memory for tpu_custom_call.1']
    #allocation9 [shape = 'u8[32768]{0}', space=vmem, size = 0x8000, scoped, tag = 'input window, operand 2, single buffered']
    #allocation10 [shape = 'u8[32768]{0}', space=vmem, size = 0x8000, scoped, tag = 'input window, operand 4, single buffered']
    #allocation11 [shape = 's32[1]{0}', space=sflag, size = 0x4, scoped, tag = 'scoped memory for tpu_custom_call.1']
    #allocation12 [shape = 'u8[32768]{0}', space=vmem, size = 0x8000, scoped, tag = 'input window, operand 6, single buffered']
    #allocation13 [shape = 'u8[4096]{0}', space=vmem, size = 0x1000, scoped, tag = 'output window, operand 0, single buffered']
    %13 = vsyncpa [#allocation5], 0
    %14 = vsyncpa [#allocation8], 0
    %15 = vsyncpa [#allocation11], 0
    %16 = vsyncpa [#allocation6], 0
    // Predicated region
    $region2: #{tpu_custom_call.1} parent=1 // pred_check
      _
    $region3: #{tpu_custom_call.1} parent=1 // pred_check_branch
      %18 = sbr.rel (0) target = $region5
    $region4: #{tpu_custom_call.1} parent=1 // pred_region
      %s20 = ssub.s32 2048, 2048
      %21 = vsyncadd [#allocation5], %s20
      %s22 = sshll.u32 [#allocation4], 4
      %s23 = int_to_ptr.vmem [resolvable:$true] %s22
      %28 = dma.hbm_to_vmem [thread:$0]  %s0, 2048, %s23, [#allocation5], 256, 256, 16
    $region5: #{tpu_custom_call.1} parent=1 // pred_fallthru
      _
    // Predicated region
    $region6: #{tpu_custom_call.1} parent=1 // pred_check
      _
    $region7: #{tpu_custom_call.1} parent=1 // pred_check_branch
      %30 = sbr.rel (0) target = $region9
    $region8: #{tpu_custom_call.1} parent=1 // pred_region
      %s32 = ssub.s32 4096, 4096
      %33 = vsyncadd [#allocation8], %s32
      %s34 = sshll.u32 [#allocation7], 4
      %s35 = int_to_ptr.vmem [resolvable:$true] %s34
      %40 = dma.hbm_to_vmem [thread:$0]  %s1, 4096, %s35, [#allocation8], 256, 256, 16
    $region9: #{tpu_custom_call.1} parent=1 // pred_fallthru
      _
    // Predicated region
    $region10: #{tpu_custom_call.1} parent=1 // pred_check
      _
    $region11: #{tpu_custom_call.1} parent=1 // pred_check_branch
      %42 = sbr.rel (0) target = $region13
    $region12: #{tpu_custom_call.1} parent=1 // pred_region
      %s44 = ssub.s32 1024, 1024
      %45 = vsyncadd [#allocation8], %s44
      %s46 = sshll.u32 [#allocation9], 4
      %s47 = int_to_ptr.vmem [resolvable:$true] %s46
      %52 = dma.hbm_to_vmem [thread:$0]  %s2, 1024, %s47, [#allocation8], 64, 64, 4
    $region13: #{tpu_custom_call.1} parent=1 // pred_fallthru
      _
    // Predicated region
    $region14: #{tpu_custom_call.1} parent=1 // pred_check
      _
    $region15: #{tpu_custom_call.1} parent=1 // pred_check_branch
      %54 = sbr.rel (0) target = $region17
    $region16: #{tpu_custom_call.1} parent=1 // pred_region
      _
    $region17: #{tpu_custom_call.1} parent=1 // pred_fallthru
      _
    // Predicated region
    $region18: #{tpu_custom_call.1} parent=1 // pred_check
      _
    $region19: #{tpu_custom_call.1} parent=1 // pred_check_branch
      %56 = sbr.rel (0) target = $region21
    $region20: #{tpu_custom_call.1} parent=1 // pred_region
      %s58 = ssub.s32 1024, 1024
      %59 = vsyncadd [#allocation11], %s58
      %s60 = sshll.u32 [#allocation10], 4
      %s61 = int_to_ptr.vmem [resolvable:$true] %s60
      %66 = dma.hbm_to_vmem [thread:$0]  %s4, 1024, %s61, [#allocation11], 64, 64, 4
    $region21: #{tpu_custom_call.1} parent=1 // pred_fallthru
      _
    // Predicated region
    $region22: #{tpu_custom_call.1} parent=1 // pred_check
      _
    $region23: #{tpu_custom_call.1} parent=1 // pred_check_branch
      %68 = sbr.rel (0) target = $region25
    $region24: #{tpu_custom_call.1} parent=1 // pred_region
      _
    $region25: #{tpu_custom_call.1} parent=1 // pred_fallthru
      _
    // Predicated region
    $region26: #{tpu_custom_call.1} parent=1 // pred_check
      _
    $region27: #{tpu_custom_call.1} parent=1 // pred_check_branch
      %70 = sbr.rel (0) target = $region29
    $region28: #{tpu_custom_call.1} parent=1 // pred_region
      %s72 = ssub.s32 1024, 1024
      %73 = vsyncadd [#allocation11], %s72
      %s74 = sshll.u32 [#allocation12], 4
      %s75 = int_to_ptr.vmem [resolvable:$true] %s74
      %80 = dma.hbm_to_vmem [thread:$0]  %s6, 1024, %s75, [#allocation11], 64, 64, 4
    $region29: #{tpu_custom_call.1} parent=1 // pred_fallthru
      _
    // Predicated region
    $region30: #{tpu_custom_call.1} parent=1 // pred_check
      _
    $region31: #{tpu_custom_call.1} parent=1 // pred_check_branch
      %82 = sbr.rel (0) target = $region33
    $region32: #{tpu_custom_call.1} parent=1 // pred_region
      _
    $region33: #{tpu_custom_call.1} parent=1 // pred_fallthru
      _
    // Predicated region
    $region34: #{tpu_custom_call.1} parent=1 // pred_check
      _
    $region35: #{tpu_custom_call.1} parent=1 // pred_check_branch
      %84 = sbr.rel (0) target = $region37
    $region36: #{tpu_custom_call.1} parent=1 // pred_region
      %85 = dma.done [#allocation5], 2048
    $region37: #{tpu_custom_call.1} parent=1 // pred_fallthru
      _
    // Predicated region
    $region38: #{tpu_custom_call.1} parent=1 // pred_check
      _
    $region39: #{tpu_custom_call.1} parent=1 // pred_check_branch
      %87 = sbr.rel (0) target = $region41
    $region40: #{tpu_custom_call.1} parent=1 // pred_region
      %88 = dma.done [#allocation8], 4096
    $region41: #{tpu_custom_call.1} parent=1 // pred_fallthru
      _
    // Predicated region
    $region42: #{tpu_custom_call.1} parent=1 // pred_check
      _
    $region43: #{tpu_custom_call.1} parent=1 // pred_check_branch
      %90 = sbr.rel (0) target = $region45
    $region44: #{tpu_custom_call.1} parent=1 // pred_region
      %91 = dma.done [#allocation8], 1024
    $region45: #{tpu_custom_call.1} parent=1 // pred_fallthru
      _
    // Predicated region
    $region46: #{tpu_custom_call.1} parent=1 // pred_check
      _
    $region47: #{tpu_custom_call.1} parent=1 // pred_check_branch
      %93 = sbr.rel (0) target = $region49
    $region48: #{tpu_custom_call.1} parent=1 // pred_region
      %94 = dma.done [#allocation11], 1024
    $region49: #{tpu_custom_call.1} parent=1 // pred_fallthru
      _
    // Predicated region
    $region50: #{tpu_custom_call.1} parent=1 // pred_check
      _
    $region51: #{tpu_custom_call.1} parent=1 // pred_check_branch
      %96 = sbr.rel (0) target = $region53
    $region52: #{tpu_custom_call.1} parent=1 // pred_region
      %97 = dma.done [#allocation11], 1024
    $region53: #{tpu_custom_call.1} parent=1 // pred_fallthru
      _
    %p99 = scmp.eq.s32.totalorder 0, 0
    // Predicated region
    $region54: #{tpu_custom_call.1} parent=1 // pred_check
      %p100 = pneg %p99
    $region55: #{tpu_custom_call.1} parent=1 // pred_check_branch
      %102 = sbr.rel (%p100) target = $region57
    $region56: #{tpu_custom_call.1} parent=1 // pred_region
      %103 = vst [vmem:[#allocation2] sm:$0xff] 0.0
      %104 = vst [vmem:[#allocation3] sm:$0xff] 0.0
    $region57: #{tpu_custom_call.1} parent=1 // pred_fallthru
      _
    %v105 = vld [vmem:[#allocation2] sm:$0xff]
    %v106 = vld [vmem:[#allocation3] sm:$0xff]
    %v107 = vpack.c.bf16 %v105, %v105
    %v108 = vld [vmem:[#allocation7] sm:$0xff]
    %v109 = vld [vmem:[#allocation7 + $0x8] sm:$0xff]
    %v110 = vld [vmem:[#allocation7 + $0x10] sm:$0xff]
    %v111 = vld [vmem:[#allocation7 + $0x18] sm:$0xff]
    %v112 = vld [vmem:[#allocation7 + $0x20] sm:$0xff]
    %v113 = vld [vmem:[#allocation7 + $0x28] sm:$0xff]
    %v114 = vld [vmem:[#allocation7 + $0x30] sm:$0xff]
    %v115 = vld [vmem:[#allocation7 + $0x38] sm:$0xff]
    %v116 = vld [vmem:[#allocation7 + $0x40] sm:$0xff]
    %v117 = vld [vmem:[#allocation7 + $0x48] sm:$0xff]
    %v118 = vld [vmem:[#allocation7 + $0x50] sm:$0xff]
    %v119 = vld [vmem:[#allocation7 + $0x58] sm:$0xff]
    %v120 = vld [vmem:[#allocation7 + $0x60] sm:$0xff]
    %v121 = vld [vmem:[#allocation7 + $0x68] sm:$0xff]
    %v122 = vld [vmem:[#allocation7 + $0x70] sm:$0xff]
    %v123 = vld [vmem:[#allocation7 + $0x78] sm:$0xff]
    %v124 = vld [vmem:[#allocation7 + $0x80] sm:$0xff]
    %v125 = vld [vmem:[#allocation7 + $0x88] sm:$0xff]
    %v126 = vld [vmem:[#allocation7 + $0x90] sm:$0xff]
    %v127 = vld [vmem:[#allocation7 + $0x98] sm:$0xff]
    %v128 = vld [vmem:[#allocation7 + $0xa0] sm:$0xff]
    %v129 = vld [vmem:[#allocation7 + $0xa8] sm:$0xff]
    %v130 = vld [vmem:[#allocation7 + $0xb0] sm:$0xff]
    %v131 = vld [vmem:[#allocation7 + $0xb8] sm:$0xff]
    %v132 = vld [vmem:[#allocation7 + $0xc0] sm:$0xff]
    %v133 = vld [vmem:[#allocation7 + $0xc8] sm:$0xff]
    %v134 = vld [vmem:[#allocation7 + $0xd0] sm:$0xff]
    %v135 = vld [vmem:[#allocation7 + $0xd8] sm:$0xff]
    %v136 = vld [vmem:[#allocation7 + $0xe0] sm:$0xff]
    %v137 = vld [vmem:[#allocation7 + $0xe8] sm:$0xff]
    %v138 = vld [vmem:[#allocation7 + $0xf0] sm:$0xff]
    %v139 = vld [vmem:[#allocation7 + $0xf8] sm:$0xff]
    %v140 = vld [vmem:[#allocation4] sm:$0xff]
    %v141 = vld [vmem:[#allocation4 + $0x8] sm:$0xff]
    %v142 = vunpack.c.l.bf16 %v140
    %v143 = vunpack.c.h.bf16 %v140
    %v144 = vunpack.c.l.bf16 %v141
    %v145 = vunpack.c.h.bf16 %v141
    %v178 = vunpack.c.l.b16 %v108
    %v179 = vunpack.c.h.b16 %v108
    %v180 = vunpack.c.l.b16 %v109
    %v181 = vunpack.c.h.b16 %v109
    %v182 = vunpack.c.l.b16 %v110
    %v183 = vunpack.c.h.b16 %v110
    %v184 = vunpack.c.l.b16 %v111
    %v185 = vunpack.c.h.b16 %v111
    %v186 = vunpack.c.l.b16 %v112
    %v187 = vunpack.c.h.b16 %v112
    %v188 = vunpack.c.l.b16 %v113
    %v189 = vunpack.c.h.b16 %v113
    %v190 = vunpack.c.l.b16 %v114
    %v191 = vunpack.c.h.b16 %v114
    %v192 = vunpack.c.l.b16 %v115
    %v193 = vunpack.c.h.b16 %v115
    %v194 = vunpack.c.l.b16 %v116
    %v195 = vunpack.c.h.b16 %v116
    %v196 = vunpack.c.l.b16 %v117
    %v197 = vunpack.c.h.b16 %v117
    %v198 = vunpack.c.l.b16 %v118
    %v199 = vunpack.c.h.b16 %v118
    %v200 = vunpack.c.l.b16 %v119
    %v201 = vunpack.c.h.b16 %v119
    %v202 = vunpack.c.l.b16 %v120
    %v203 = vunpack.c.h.b16 %v120
    %v204 = vunpack.c.l.b16 %v121
    %v205 = vunpack.c.h.b16 %v121
    %v206 = vunpack.c.l.b16 %v122
    %v207 = vunpack.c.h.b16 %v122
    %v208 = vunpack.c.l.b16 %v123
    %v209 = vunpack.c.h.b16 %v123
    %v210 = vunpack.c.l.b16 %v124
    %v211 = vunpack.c.h.b16 %v124
    %v212 = vunpack.c.l.b16 %v125
    %v213 = vunpack.c.h.b16 %v125
    %v214 = vunpack.c.l.b16 %v126
    %v215 = vunpack.c.h.b16 %v126
    %v216 = vunpack.c.l.b16 %v127
    %v217 = vunpack.c.h.b16 %v127
    %v218 = vunpack.c.l.b16 %v128
    %v219 = vunpack.c.h.b16 %v128
    %v220 = vunpack.c.l.b16 %v129
    %v221 = vunpack.c.h.b16 %v129
    %v222 = vunpack.c.l.b16 %v130
    %v223 = vunpack.c.h.b16 %v130
    %v224 = vunpack.c.l.b16 %v131
    %v225 = vunpack.c.h.b16 %v131
    %v226 = vunpack.c.l.b16 %v132
    %v227 = vunpack.c.h.b16 %v132
    %v228 = vunpack.c.l.b16 %v133
    %v229 = vunpack.c.h.b16 %v133
    %v230 = vunpack.c.l.b16 %v134
    %v231 = vunpack.c.h.b16 %v134
    %v232 = vunpack.c.l.b16 %v135
    %v233 = vunpack.c.h.b16 %v135
    %v234 = vunpack.c.l.b16 %v136
    %v235 = vunpack.c.h.b16 %v136
    %v236 = vunpack.c.l.b16 %v137
    %v237 = vunpack.c.h.b16 %v137
    %v238 = vunpack.c.l.b16 %v138
    %v239 = vunpack.c.h.b16 %v138
    %v240 = vunpack.c.l.b16 %v139
    %v241 = vunpack.c.h.b16 %v139
    %v242 = vpack.c.b16 %v182, %v178
    %v243 = vpack.c.b16 %v183, %v179
    %v244 = vpack.c.b16 %v184, %v180
    %v245 = vpack.c.b16 %v185, %v181
    %v246 = vpack.c.b16 %v190, %v186
    %v247 = vpack.c.b16 %v191, %v187
    %v248 = vpack.c.b16 %v192, %v188
    %v249 = vpack.c.b16 %v193, %v189
    %v250 = vpack.c.b16 %v198, %v194
    %v251 = vpack.c.b16 %v199, %v195
    %v252 = vpack.c.b16 %v200, %v196
    %v253 = vpack.c.b16 %v201, %v197
    %v254 = vpack.c.b16 %v206, %v202
    %v255 = vpack.c.b16 %v207, %v203
    %v256 = vpack.c.b16 %v208, %v204
    %v257 = vpack.c.b16 %v209, %v205
    %v258 = vpack.c.b16 %v214, %v210
    %v259 = vpack.c.b16 %v215, %v211
    %v260 = vpack.c.b16 %v216, %v212
    %v261 = vpack.c.b16 %v217, %v213
    %v262 = vpack.c.b16 %v222, %v218
    %v263 = vpack.c.b16 %v223, %v219
    %v264 = vpack.c.b16 %v224, %v220
    %v265 = vpack.c.b16 %v225, %v221
    %v266 = vpack.c.b16 %v230, %v226
    %v267 = vpack.c.b16 %v231, %v227
    %v268 = vpack.c.b16 %v232, %v228
    %v269 = vpack.c.b16 %v233, %v229
    %v270 = vpack.c.b16 %v238, %v234
    %v271 = vpack.c.b16 %v239, %v235
    %v272 = vpack.c.b16 %v240, %v236
    %v273 = vpack.c.b16 %v241, %v237
    %306 = vmatprep.subr.bf16.mxu0 %v243
    %307 = vmatpush1.bf16.msra.mxu0 %v242
    %308 = vmatprep.subr.bf16.mxu0 %v247
    %309 = vmatpush1.bf16.msra.mxu0 %v246
    %310 = vmatprep.subr.bf16.mxu0 %v251
    %311 = vmatpush1.bf16.msra.mxu0 %v250
    %312 = vmatprep.subr.bf16.mxu0 %v255
    %313 = vmatpush1.bf16.msra.mxu0 %v254
    %314 = vmatprep.subr.bf16.mxu0 %v259
    %315 = vmatpush1.bf16.msra.mxu0 %v258
    %316 = vmatprep.subr.bf16.mxu0 %v263
    %317 = vmatpush1.bf16.msra.mxu0 %v262
    %318 = vmatprep.subr.bf16.mxu0 %v267
    %319 = vmatpush1.bf16.msra.mxu0 %v266
    %320 = vmatprep.subr.bf16.mxu0 %v271
    %321 = vmatpush1.bf16.msra.mxu0 %v270
    %322 = vmatprep.subr.bf16.mxu0 0
    %323 = vmatpush1.bf16.msra.mxu0 0
    %324 = vmatprep.subr.bf16.mxu0 0
    %325 = vmatpush1.bf16.msra.mxu0 0
    %326 = vmatprep.subr.bf16.mxu0 0
    %327 = vmatpush1.bf16.msra.mxu0 0
    %328 = vmatprep.subr.bf16.mxu0 0
    %329 = vmatpush1.bf16.msra.mxu0 0
    %330 = vmatprep.subr.bf16.mxu0 0
    %331 = vmatpush1.bf16.msra.mxu0 0
    %332 = vmatprep.subr.bf16.mxu0 0
    %333 = vmatpush1.bf16.msra.mxu0 0
    %334 = vmatprep.subr.bf16.mxu0 0
    %335 = vmatpush1.bf16.msra.mxu0 0
    %336 = vmatprep.subr.bf16.mxu0 0
    %337 = vmatpush1.bf16.msra.mxu0 0
    %338 = vmatprep.mubr.bf16.mxu0 0
    %339 = vmatmul.mubr.bf16.gmra.mrb[0].mxu0 %v107
    %v340 = vpop.f32.mrb[0].mxu0
    %v341 = vadd.f32 %v142, %v340
    %v342 = vpop.f32.mrb[0].mxu0
    %v343 = vadd.f32 %v143, %v342
    %v344 = vpop.f32.mrb[0].mxu0
    %v345 = vpop.f32.mrb[0].mxu0
    %346 = vdwg.mxu0
    %347 = vmatprep.subr.bf16.mxu0 %v245
    %348 = vmatpush1.bf16.msra.mxu0 %v244
    %349 = vmatprep.subr.bf16.mxu0 %v249
    %350 = vmatpush1.bf16.msra.mxu0 %v248
    %351 = vmatprep.subr.bf16.mxu0 %v253
    %352 = vmatpush1.bf16.msra.mxu0 %v252
    %353 = vmatprep.subr.bf16.mxu0 %v257
    %354 = vmatpush1.bf16.msra.mxu0 %v256
    %355 = vmatprep.subr.bf16.mxu0 %v261
    %356 = vmatpush1.bf16.msra.mxu0 %v260
    %357 = vmatprep.subr.bf16.mxu0 %v265
    %358 = vmatpush1.bf16.msra.mxu0 %v264
    %359 = vmatprep.subr.bf16.mxu0 %v269
    %360 = vmatpush1.bf16.msra.mxu0 %v268
    %361 = vmatprep.subr.bf16.mxu0 %v273
    %362 = vmatpush1.bf16.msra.mxu0 %v272
    %363 = vmatprep.subr.bf16.mxu0 0
    %364 = vmatpush1.bf16.msra.mxu0 0
    %365 = vmatprep.subr.bf16.mxu0 0
    %366 = vmatpush1.bf16.msra.mxu0 0
    %367 = vmatprep.subr.bf16.mxu0 0
    %368 = vmatpush1.bf16.msra.mxu0 0
    %369 = vmatprep.subr.bf16.mxu0 0
    %370 = vmatpush1.bf16.msra.mxu0 0
    %371 = vmatprep.subr.bf16.mxu0 0
    %372 = vmatpush1.bf16.msra.mxu0 0
    %373 = vmatprep.subr.bf16.mxu0 0
    %374 = vmatpush1.bf16.msra.mxu0 0
    %375 = vmatprep.subr.bf16.mxu0 0
    %376 = vmatpush1.bf16.msra.mxu0 0
    %377 = vmatprep.subr.bf16.mxu0 0
    %378 = vmatpush1.bf16.msra.mxu0 0
    %379 = vmatprep.mubr.bf16.mxu0 0
    %380 = vmatmul.mubr.bf16.gmra.mrb[0].mxu0 %v107
    %v381 = vpop.f32.mrb[0].mxu0
    %v382 = vadd.f32 %v144, %v381
    %v383 = vpop.f32.mrb[0].mxu0
    %v384 = vadd.f32 %v145, %v383
    %v385 = vpop.f32.mrb[0].mxu0
    %v386 = vpop.f32.mrb[0].mxu0
    %387 = vdwg.mxu0
    %v388 = vmul.f32 %v341, 0.5
    %v389 = vtanh.pop %v388
    %v390 = vadd.f32 %v389, 1.0
    %v391 = vmul.f32 %v390, 0.5
    %v392 = vmul.f32 %v343, 0.5
    %v393 = vtanh.pop %v392
    %v394 = vadd.f32 %v393, 1.0
    %v395 = vmul.f32 %v394, 0.5
    %v396 = vtanh.pop %v382
    %v397 = vmul.f32 %v384, 0.5
    %v398 = vtanh.pop %v397
    %v399 = vadd.f32 %v398, 1.0
    %v400 = vmul.f32 %v399, 0.5
    %v401 = vmul.f32 %v395, %v106
    %v402 = vmul.f32 %v391, %v396
    %v403 = vadd.f32 %v401, %v402
    %v404 = vtanh.pop %v403
    %v405 = vmul.f32 %v400, %v404
    %v406 = vpack.c.bf16 %v405, %v405
    %s407 = scalar_lea.vmem [#allocation4], 16
    %v408 = vld [vmem:[%s407] sm:$0xff]
    %v409 = vld [vmem:[%s407 + $0x8] sm:$0xff]
    %v410 = vunpack.c.l.bf16 %v408
    %v411 = vunpack.c.h.bf16 %v408
    %v412 = vunpack.c.l.bf16 %v409
    %v413 = vunpack.c.h.bf16 %v409
    %414 = vmatprep.subr.bf16.mxu0 %v243
    %415 = vmatpush1.bf16.msra.mxu0 %v242
    %416 = vmatprep.subr.bf16.mxu0 %v247
    %417 = vmatpush1.bf16.msra.mxu0 %v246
    %418 = vmatprep.subr.bf16.mxu0 %v251
    %419 = vmatpush1.bf16.msra.mxu0 %v250
    %420 = vmatprep.subr.bf16.mxu0 %v255
    %421 = vmatpush1.bf16.msra.mxu0 %v254
    %422 = vmatprep.subr.bf16.mxu0 %v259
    %423 = vmatpush1.bf16.msra.mxu0 %v258
    %424 = vmatprep.subr.bf16.mxu0 %v263
    %425 = vmatpush1.bf16.msra.mxu0 %v262
    %426 = vmatprep.subr.bf16.mxu0 %v267
    %427 = vmatpush1.bf16.msra.mxu0 %v266
    %428 = vmatprep.subr.bf16.mxu0 %v271
    %429 = vmatpush1.bf16.msra.mxu0 %v270
    %430 = vmatprep.subr.bf16.mxu0 0
    %431 = vmatpush1.bf16.msra.mxu0 0
    %432 = vmatprep.subr.bf16.mxu0 0
    %433 = vmatpush1.bf16.msra.mxu0 0
    %434 = vmatprep.subr.bf16.mxu0 0
    %435 = vmatpush1.bf16.msra.mxu0 0
    %436 = vmatprep.subr.bf16.mxu0 0
    %437 = vmatpush1.bf16.msra.mxu0 0
    %438 = vmatprep.subr.bf16.mxu0 0
    %439 = vmatpush1.bf16.msra.mxu0 0
    %440 = vmatprep.subr.bf16.mxu0 0
    %441 = vmatpush1.bf16.msra.mxu0 0
    %442 = vmatprep.subr.bf16.mxu0 0
    %443 = vmatpush1.bf16.msra.mxu0 0
    %444 = vmatprep.subr.bf16.mxu0 0
    %445 = vmatpush1.bf16.msra.mxu0 0
    %446 = vmatprep.mubr.bf16.mxu0 0
    %447 = vmatmul.mubr.bf16.gmra.mrb[0].mxu0 %v406
    %v448 = vpop.f32.mrb[0].mxu0
    %v449 = vadd.f32 %v410, %v448
    %v450 = vpop.f32.mrb[0].mxu0
    %v451 = vadd.f32 %v411, %v450
    %v452 = vpop.f32.mrb[0].mxu0
    %v453 = vpop.f32.mrb[0].mxu0
    %454 = vdwg.mxu0
    %455 = vmatprep.subr.bf16.mxu0 %v245
    %456 = vmatpush1.bf16.msra.mxu0 %v244
    %457 = vmatprep.subr.bf16.mxu0 %v249
    %458 = vmatpush1.bf16.msra.mxu0 %v248
    %459 = vmatprep.subr.bf16.mxu0 %v253
    %460 = vmatpush1.bf16.msra.mxu0 %v252
    %461 = vmatprep.subr.bf16.mxu0 %v257
    %462 = vmatpush1.bf16.msra.mxu0 %v256
    %463 = vmatprep.subr.bf16.mxu0 %v261
    %464 = vmatpush1.bf16.msra.mxu0 %v260
    %465 = vmatprep.subr.bf16.mxu0 %v265
    %466 = vmatpush1.bf16.msra.mxu0 %v264
    %467 = vmatprep.subr.bf16.mxu0 %v269
    %468 = vmatpush1.bf16.msra.mxu0 %v268
    %469 = vmatprep.subr.bf16.mxu0 %v273
    %470 = vmatpush1.bf16.msra.mxu0 %v272
    %471 = vmatprep.subr.bf16.mxu0 0
    %472 = vmatpush1.bf16.msra.mxu0 0
    %473 = vmatprep.subr.bf16.mxu0 0
    %474 = vmatpush1.bf16.msra.mxu0 0
    %475 = vmatprep.subr.bf16.mxu0 0
    %476 = vmatpush1.bf16.msra.mxu0 0
    %477 = vmatprep.subr.bf16.mxu0 0
    %478 = vmatpush1.bf16.msra.mxu0 0
    %479 = vmatprep.subr.bf16.mxu0 0
    %480 = vmatpush1.bf16.msra.mxu0 0
    %481 = vmatprep.subr.bf16.mxu0 0
    %482 = vmatpush1.bf16.msra.mxu0 0
    %483 = vmatprep.subr.bf16.mxu0 0
    %484 = vmatpush1.bf16.msra.mxu0 0
    %485 = vmatprep.subr.bf16.mxu0 0
    %486 = vmatpush1.bf16.msra.mxu0 0
    %487 = vmatprep.mubr.bf16.mxu0 0
    %488 = vmatmul.mubr.bf16.gmra.mrb[0].mxu0 %v406
    %v489 = vpop.f32.mrb[0].mxu0
    %v490 = vadd.f32 %v412, %v489
    %v491 = vpop.f32.mrb[0].mxu0
    %v492 = vadd.f32 %v413, %v491
    %v493 = vpop.f32.mrb[0].mxu0
    %v494 = vpop.f32.mrb[0].mxu0
    %495 = vdwg.mxu0
    %v496 = vmul.f32 %v449, 0.5
    %v497 = vtanh.pop %v496
    %v498 = vadd.f32 %v497, 1.0
    %v499 = vmul.f32 %v498, 0.5
    %v500 = vmul.f32 %v451, 0.5
    %v501 = vtanh.pop %v500
    %v502 = vadd.f32 %v501, 1.0
    %v503 = vmul.f32 %v502, 0.5
    %v504 = vtanh.pop %v490
    %v505 = vmul.f32 %v492, 0.5
    %v506 = vtanh.pop %v505
    %v507 = vadd.f32 %v506, 1.0
    %v508 = vmul.f32 %v507, 0.5
    %v509 = vmul.f32 %v503, %v403
    %v510 = vmul.f32 %v499, %v504
    %v511 = vadd.f32 %v509, %v510
    %v512 = vtanh.pop %v511
    %v513 = vmul.f32 %v508, %v512
    %v514 = vpack.c.bf16 %v513, %v513
    %s515 = scalar_lea.vmem [#allocation4], 32
    %v516 = vld [vmem:[%s515] sm:$0xff]
    %v517 = vld [vmem:[%s515 + $0x8] sm:$0xff]
    %v518 = vunpack.c.l.bf16 %v516
    %v519 = vunpack.c.h.bf16 %v516
    %v520 = vunpack.c.l.bf16 %v517
    %v521 = vunpack.c.h.bf16 %v517
    %522 = vmatprep.subr.bf16.mxu0 %v243
    %523 = vmatpush1.bf16.msra.mxu0 %v242
    %524 = vmatprep.subr.bf16.mxu0 %v247
    %525 = vmatpush1.bf16.msra.mxu0 %v246
    %526 = vmatprep.subr.bf16.mxu0 %v251
    %527 = vmatpush1.bf16.msra.mxu0 %v250
    %528 = vmatprep.subr.bf16.mxu0 %v255
    %529 = vmatpush1.bf16.msra.mxu0 %v254
    %530 = vmatprep.subr.bf16.mxu0 %v259
    %531 = vmatpush1.bf16.msra.mxu0 %v258
    %532 = vmatprep.subr.bf16.mxu0 %v263
    %533 = vmatpush1.bf16.msra.mxu0 %v262
    %534 = vmatprep.subr.bf16.mxu0 %v267
    %535 = vmatpush1.bf16.msra.mxu0 %v266
    %536 = vmatprep.subr.bf16.mxu0 %v271
    %537 = vmatpush1.bf16.msra.mxu0 %v270
    %538 = vmatprep.subr.bf16.mxu0 0
    %539 = vmatpush1.bf16.msra.mxu0 0
    %540 = vmatprep.subr.bf16.mxu0 0
    %541 = vmatpush1.bf16.msra.mxu0 0
    %542 = vmatprep.subr.bf16.mxu0 0
    %543 = vmatpush1.bf16.msra.mxu0 0
    %544 = vmatprep.subr.bf16.mxu0 0
    %545 = vmatpush1.bf16.msra.mxu0 0
    %546 = vmatprep.subr.bf16.mxu0 0
    %547 = vmatpush1.bf16.msra.mxu0 0
    %548 = vmatprep.subr.bf16.mxu0 0
    %549 = vmatpush1.bf16.msra.mxu0 0
    %550 = vmatprep.subr.bf16.mxu0 0
    %551 = vmatpush1.bf16.msra.mxu0 0
    %552 = vmatprep.subr.bf16.mxu0 0
    %553 = vmatpush1.bf16.msra.mxu0 0
    %554 = vmatprep.mubr.bf16.mxu0 0
    %555 = vmatmul.mubr.bf16.gmra.mrb[0].mxu0 %v514
    %v556 = vpop.f32.mrb[0].mxu0
    %v557 = vadd.f32 %v518, %v556
    %v558 = vpop.f32.mrb[0].mxu0
    %v559 = vadd.f32 %v519, %v558
    %v560 = vpop.f32.mrb[0].mxu0
    %v561 = vpop.f32.mrb[0].mxu0
    %562 = vdwg.mxu0
    %563 = vmatprep.subr.bf16.mxu0 %v245
    %564 = vmatpush1.bf16.msra.mxu0 %v244
    %565 = vmatprep.subr.bf16.mxu0 %v249
    %566 = vmatpush1.bf16.msra.mxu0 %v248
    %567 = vmatprep.subr.bf16.mxu0 %v253
    %568 = vmatpush1.bf16.msra.mxu0 %v252
    %569 = vmatprep.subr.bf16.mxu0 %v257
    %570 = vmatpush1.bf16.msra.mxu0 %v256
    %571 = vmatprep.subr.bf16.mxu0 %v261
    %572 = vmatpush1.bf16.msra.mxu0 %v260
    %573 = vmatprep.subr.bf16.mxu0 %v265
    %574 = vmatpush1.bf16.msra.mxu0 %v264
    %575 = vmatprep.subr.bf16.mxu0 %v269
    %576 = vmatpush1.bf16.msra.mxu0 %v268
    %577 = vmatprep.subr.bf16.mxu0 %v273
    %578 = vmatpush1.bf16.msra.mxu0 %v272
    %579 = vmatprep.subr.bf16.mxu0 0
    %580 = vmatpush1.bf16.msra.mxu0 0
    %581 = vmatprep.subr.bf16.mxu0 0
    %582 = vmatpush1.bf16.msra.mxu0 0
    %583 = vmatprep.subr.bf16.mxu0 0
    %584 = vmatpush1.bf16.msra.mxu0 0
    %585 = vmatprep.subr.bf16.mxu0 0
    %586 = vmatpush1.bf16.msra.mxu0 0
    %587 = vmatprep.subr.bf16.mxu0 0
    %588 = vmatpush1.bf16.msra.mxu0 0
    %589 = vmatprep.subr.bf16.mxu0 0
    %590 = vmatpush1.bf16.msra.mxu0 0
    %591 = vmatprep.subr.bf16.mxu0 0
    %592 = vmatpush1.bf16.msra.mxu0 0
    %593 = vmatprep.subr.bf16.mxu0 0
    %594 = vmatpush1.bf16.msra.mxu0 0
    %595 = vmatprep.mubr.bf16.mxu0 0
    %596 = vmatmul.mubr.bf16.gmra.mrb[0].mxu0 %v514
    %v597 = vpop.f32.mrb[0].mxu0
    %v598 = vadd.f32 %v520, %v597
    %v599 = vpop.f32.mrb[0].mxu0
    %v600 = vadd.f32 %v521, %v599
    %v601 = vpop.f32.mrb[0].mxu0
    %v602 = vpop.f32.mrb[0].mxu0
    %603 = vdwg.mxu0
    %v604 = vmul.f32 %v557, 0.5
    %v605 = vtanh.pop %v604
    %v606 = vadd.f32 %v605, 1.0
    %v607 = vmul.f32 %v606, 0.5
    %v608 = vmul.f32 %v559, 0.5
    %v609 = vtanh.pop %v608
    %v610 = vadd.f32 %v609, 1.0
    %v611 = vmul.f32 %v610, 0.5
    %v612 = vtanh.pop %v598
    %v613 = vmul.f32 %v600, 0.5
    %v614 = vtanh.pop %v613
    %v615 = vadd.f32 %v614, 1.0
    %v616 = vmul.f32 %v615, 0.5
    %v617 = vmul.f32 %v611, %v511
    %v618 = vmul.f32 %v607, %v612
    %v619 = vadd.f32 %v617, %v618
    %v620 = vtanh.pop %v619
    %v621 = vmul.f32 %v616, %v620
    %v622 = vpack.c.bf16 %v621, %v621
    %s623 = scalar_lea.vmem [#allocation4], 48
    %v624 = vld [vmem:[%s623] sm:$0xff]
    %v625 = vld [vmem:[%s623 + $0x8] sm:$0xff]
    %v626 = vunpack.c.l.bf16 %v624
    %v627 = vunpack.c.h.bf16 %v624
    %v628 = vunpack.c.l.bf16 %v625
    %v629 = vunpack.c.h.bf16 %v625
    %630 = vmatprep.subr.bf16.mxu0 %v243
    %631 = vmatpush1.bf16.msra.mxu0 %v242
    %632 = vmatprep.subr.bf16.mxu0 %v247
    %633 = vmatpush1.bf16.msra.mxu0 %v246
    %634 = vmatprep.subr.bf16.mxu0 %v251
    %635 = vmatpush1.bf16.msra.mxu0 %v250
    %636 = vmatprep.subr.bf16.mxu0 %v255
    %637 = vmatpush1.bf16.msra.mxu0 %v254
    %638 = vmatprep.subr.bf16.mxu0 %v259
    %639 = vmatpush1.bf16.msra.mxu0 %v258
    %640 = vmatprep.subr.bf16.mxu0 %v263
    %641 = vmatpush1.bf16.msra.mxu0 %v262
    %642 = vmatprep.subr.bf16.mxu0 %v267
    %643 = vmatpush1.bf16.msra.mxu0 %v266
    %644 = vmatprep.subr.bf16.mxu0 %v271
    %645 = vmatpush1.bf16.msra.mxu0 %v270
    %646 = vmatprep.subr.bf16.mxu0 0
    %647 = vmatpush1.bf16.msra.mxu0 0
    %648 = vmatprep.subr.bf16.mxu0 0
    %649 = vmatpush1.bf16.msra.mxu0 0
    %650 = vmatprep.subr.bf16.mxu0 0
    %651 = vmatpush1.bf16.msra.mxu0 0
    %652 = vmatprep.subr.bf16.mxu0 0
    %653 = vmatpush1.bf16.msra.mxu0 0
    %654 = vmatprep.subr.bf16.mxu0 0
    %655 = vmatpush1.bf16.msra.mxu0 0
    %656 = vmatprep.subr.bf16.mxu0 0
    %657 = vmatpush1.bf16.msra.mxu0 0
    %658 = vmatprep.subr.bf16.mxu0 0
    %659 = vmatpush1.bf16.msra.mxu0 0
    %660 = vmatprep.subr.bf16.mxu0 0
    %661 = vmatpush1.bf16.msra.mxu0 0
    %662 = vmatprep.mubr.bf16.mxu0 0
    %663 = vmatmul.mubr.bf16.gmra.mrb[0].mxu0 %v622
    %v664 = vpop.f32.mrb[0].mxu0
    %v665 = vadd.f32 %v626, %v664
    %v666 = vpop.f32.mrb[0].mxu0
    %v667 = vadd.f32 %v627, %v666
    %v668 = vpop.f32.mrb[0].mxu0
    %v669 = vpop.f32.mrb[0].mxu0
    %670 = vdwg.mxu0
    %671 = vmatprep.subr.bf16.mxu0 %v245
    %672 = vmatpush1.bf16.msra.mxu0 %v244
    %673 = vmatprep.subr.bf16.mxu0 %v249
    %674 = vmatpush1.bf16.msra.mxu0 %v248
    %675 = vmatprep.subr.bf16.mxu0 %v253
    %676 = vmatpush1.bf16.msra.mxu0 %v252
    %677 = vmatprep.subr.bf16.mxu0 %v257
    %678 = vmatpush1.bf16.msra.mxu0 %v256
    %679 = vmatprep.subr.bf16.mxu0 %v261
    %680 = vmatpush1.bf16.msra.mxu0 %v260
    %681 = vmatprep.subr.bf16.mxu0 %v265
    %682 = vmatpush1.bf16.msra.mxu0 %v264
    %683 = vmatprep.subr.bf16.mxu0 %v269
    %684 = vmatpush1.bf16.msra.mxu0 %v268
    %685 = vmatprep.subr.bf16.mxu0 %v273
    %686 = vmatpush1.bf16.msra.mxu0 %v272
    %687 = vmatprep.subr.bf16.mxu0 0
    %688 = vmatpush1.bf16.msra.mxu0 0
    %689 = vmatprep.subr.bf16.mxu0 0
    %690 = vmatpush1.bf16.msra.mxu0 0
    %691 = vmatprep.subr.bf16.mxu0 0
    %692 = vmatpush1.bf16.msra.mxu0 0
    %693 = vmatprep.subr.bf16.mxu0 0
    %694 = vmatpush1.bf16.msra.mxu0 0
    %695 = vmatprep.subr.bf16.mxu0 0
    %696 = vmatpush1.bf16.msra.mxu0 0
    %697 = vmatprep.subr.bf16.mxu0 0
    %698 = vmatpush1.bf16.msra.mxu0 0
    %699 = vmatprep.subr.bf16.mxu0 0
    %700 = vmatpush1.bf16.msra.mxu0 0
    %701 = vmatprep.subr.bf16.mxu0 0
    %702 = vmatpush1.bf16.msra.mxu0 0
    %703 = vmatprep.mubr.bf16.mxu0 0
    %704 = vmatmul.mubr.bf16.gmra.mrb[0].mxu0 %v622
    %v705 = vpop.f32.mrb[0].mxu0
    %v706 = vadd.f32 %v628, %v705
    %v707 = vpop.f32.mrb[0].mxu0
    %v708 = vadd.f32 %v629, %v707
    %v709 = vpop.f32.mrb[0].mxu0
    %v710 = vpop.f32.mrb[0].mxu0
    %711 = vdwg.mxu0
    %v712 = vmul.f32 %v665, 0.5
    %v713 = vtanh.pop %v712
    %v714 = vadd.f32 %v713, 1.0
    %v715 = vmul.f32 %v714, 0.5
    %v716 = vmul.f32 %v667, 0.5
    %v717 = vtanh.pop %v716
    %v718 = vadd.f32 %v717, 1.0
    %v719 = vmul.f32 %v718, 0.5
    %v720 = vtanh.pop %v706
    %v721 = vmul.f32 %v708, 0.5
    %v722 = vtanh.pop %v721
    %v723 = vadd.f32 %v722, 1.0
    %v724 = vmul.f32 %v723, 0.5
    %v725 = vmul.f32 %v719, %v619
    %v726 = vmul.f32 %v715, %v720
    %v727 = vadd.f32 %v725, %v726
    %v728 = vtanh.pop %v727
    %v729 = vmul.f32 %v724, %v728
    %v730 = vpack.c.bf16 %v729, %v729
    %s731 = scalar_lea.vmem [#allocation4], 64
    %v732 = vld [vmem:[%s731] sm:$0xff]
    %v733 = vld [vmem:[%s731 + $0x8] sm:$0xff]
    %v734 = vunpack.c.l.bf16 %v732
    %v735 = vunpack.c.h.bf16 %v732
    %v736 = vunpack.c.l.bf16 %v733
    %v737 = vunpack.c.h.bf16 %v733
    %738 = vmatprep.subr.bf16.mxu0 %v243
    %739 = vmatpush1.bf16.msra.mxu0 %v242
    %740 = vmatprep.subr.bf16.mxu0 %v247
    %741 = vmatpush1.bf16.msra.mxu0 %v246
    %742 = vmatprep.subr.bf16.mxu0 %v251
    %743 = vmatpush1.bf16.msra.mxu0 %v250
    %744 = vmatprep.subr.bf16.mxu0 %v255
    %745 = vmatpush1.bf16.msra.mxu0 %v254
    %746 = vmatprep.subr.bf16.mxu0 %v259
    %747 = vmatpush1.bf16.msra.mxu0 %v258
    %748 = vmatprep.subr.bf16.mxu0 %v263
    %749 = vmatpush1.bf16.msra.mxu0 %v262
    %750 = vmatprep.subr.bf16.mxu0 %v267
    %751 = vmatpush1.bf16.msra.mxu0 %v266
    %752 = vmatprep.subr.bf16.mxu0 %v271
    %753 = vmatpush1.bf16.msra.mxu0 %v270
    %754 = vmatprep.subr.bf16.mxu0 0
    %755 = vmatpush1.bf16.msra.mxu0 0
    %756 = vmatprep.subr.bf16.mxu0 0
    %757 = vmatpush1.bf16.msra.mxu0 0
    %758 = vmatprep.subr.bf16.mxu0 0
    %759 = vmatpush1.bf16.msra.mxu0 0
    %760 = vmatprep.subr.bf16.mxu0 0
    %761 = vmatpush1.bf16.msra.mxu0 0
    %762 = vmatprep.subr.bf16.mxu0 0
    %763 = vmatpush1.bf16.msra.mxu0 0
    %764 = vmatprep.subr.bf16.mxu0 0
    %765 = vmatpush1.bf16.msra.mxu0 0
    %766 = vmatprep.subr.bf16.mxu0 0
    %767 = vmatpush1.bf16.msra.mxu0 0
    %768 = vmatprep.subr.bf16.mxu0 0
    %769 = vmatpush1.bf16.msra.mxu0 0
    %770 = vmatprep.mubr.bf16.mxu0 0
    %771 = vmatmul.mubr.bf16.gmra.mrb[0].mxu0 %v730
    %v772 = vpop.f32.mrb[0].mxu0
    %v773 = vadd.f32 %v734, %v772
    %v774 = vpop.f32.mrb[0].mxu0
    %v775 = vadd.f32 %v735, %v774
    %v776 = vpop.f32.mrb[0].mxu0
    %v777 = vpop.f32.mrb[0].mxu0
    %778 = vdwg.mxu0
    %779 = vmatprep.subr.bf16.mxu0 %v245
    %780 = vmatpush1.bf16.msra.mxu0 %v244
    %781 = vmatprep.subr.bf16.mxu0 %v249
    %782 = vmatpush1.bf16.msra.mxu0 %v248
    %783 = vmatprep.subr.bf16.mxu0 %v253
    %784 = vmatpush1.bf16.msra.mxu0 %v252
    %785 = vmatprep.subr.bf16.mxu0 %v257
    %786 = vmatpush1.bf16.msra.mxu0 %v256
    %787 = vmatprep.subr.bf16.mxu0 %v261
    %788 = vmatpush1.bf16.msra.mxu0 %v260
    %789 = vmatprep.subr.bf16.mxu0 %v265
    %790 = vmatpush1.bf16.msra.mxu0 %v264
    %791 = vmatprep.subr.bf16.mxu0 %v269
    %792 = vmatpush1.bf16.msra.mxu0 %v268
    %793 = vmatprep.subr.bf16.mxu0 %v273
    %794 = vmatpush1.bf16.msra.mxu0 %v272
    %795 = vmatprep.subr.bf16.mxu0 0
    %796 = vmatpush1.bf16.msra.mxu0 0
    %797 = vmatprep.subr.bf16.mxu0 0
    %798 = vmatpush1.bf16.msra.mxu0 0
    %799 = vmatprep.subr.bf16.mxu0 0
    %800 = vmatpush1.bf16.msra.mxu0 0
    %801 = vmatprep.subr.bf16.mxu0 0
    %802 = vmatpush1.bf16.msra.mxu0 0
    %803 = vmatprep.subr.bf16.mxu0 0
    %804 = vmatpush1.bf16.msra.mxu0 0
    %805 = vmatprep.subr.bf16.mxu0 0
    %806 = vmatpush1.bf16.msra.mxu0 0
    %807 = vmatprep.subr.bf16.mxu0 0
    %808 = vmatpush1.bf16.msra.mxu0 0
    %809 = vmatprep.subr.bf16.mxu0 0
    %810 = vmatpush1.bf16.msra.mxu0 0
    %811 = vmatprep.mubr.bf16.mxu0 0
    %812 = vmatmul.mubr.bf16.gmra.mrb[0].mxu0 %v730
    %v813 = vpop.f32.mrb[0].mxu0
    %v814 = vadd.f32 %v736, %v813
    %v815 = vpop.f32.mrb[0].mxu0
    %v816 = vadd.f32 %v737, %v815
    %v817 = vpop.f32.mrb[0].mxu0
    %v818 = vpop.f32.mrb[0].mxu0
    %819 = vdwg.mxu0
    %v820 = vmul.f32 %v773, 0.5
    %v821 = vtanh.pop %v820
    %v822 = vadd.f32 %v821, 1.0
    %v823 = vmul.f32 %v822, 0.5
    %v824 = vmul.f32 %v775, 0.5
    %v825 = vtanh.pop %v824
    %v826 = vadd.f32 %v825, 1.0
    %v827 = vmul.f32 %v826, 0.5
    %v828 = vtanh.pop %v814
    %v829 = vmul.f32 %v816, 0.5
    %v830 = vtanh.pop %v829
    %v831 = vadd.f32 %v830, 1.0
    %v832 = vmul.f32 %v831, 0.5
    %v833 = vmul.f32 %v827, %v727
    %v834 = vmul.f32 %v823, %v828
    %v835 = vadd.f32 %v833, %v834
    %v836 = vtanh.pop %v835
    %v837 = vmul.f32 %v832, %v836
    %v838 = vpack.c.bf16 %v837, %v837
    %s839 = scalar_lea.vmem [#allocation4], 80
    %v840 = vld [vmem:[%s839] sm:$0xff]
    %v841 = vld [vmem:[%s839 + $0x8] sm:$0xff]
    %v842 = vunpack.c.l.bf16 %v840
    %v843 = vunpack.c.h.bf16 %v840
    %v844 = vunpack.c.l.bf16 %v841
    %v845 = vunpack.c.h.bf16 %v841
    %846 = vmatprep.subr.bf16.mxu0 %v243
    %847 = vmatpush1.bf16.msra.mxu0 %v242
    %848 = vmatprep.subr.bf16.mxu0 %v247
    %849 = vmatpush1.bf16.msra.mxu0 %v246
    %850 = vmatprep.subr.bf16.mxu0 %v251
    %851 = vmatpush1.bf16.msra.mxu0 %v250
    %852 = vmatprep.subr.bf16.mxu0 %v255
    %853 = vmatpush1.bf16.msra.mxu0 %v254
    %854 = vmatprep.subr.bf16.mxu0 %v259
    %855 = vmatpush1.bf16.msra.mxu0 %v258
    %856 = vmatprep.subr.bf16.mxu0 %v263
    %857 = vmatpush1.bf16.msra.mxu0 %v262
    %858 = vmatprep.subr.bf16.mxu0 %v267
    %859 = vmatpush1.bf16.msra.mxu0 %v266
    %860 = vmatprep.subr.bf16.mxu0 %v271
    %861 = vmatpush1.bf16.msra.mxu0 %v270
    %862 = vmatprep.subr.bf16.mxu0 0
    %863 = vmatpush1.bf16.msra.mxu0 0
    %864 = vmatprep.subr.bf16.mxu0 0
    %865 = vmatpush1.bf16.msra.mxu0 0
    %866 = vmatprep.subr.bf16.mxu0 0
    %867 = vmatpush1.bf16.msra.mxu0 0
    %868 = vmatprep.subr.bf16.mxu0 0
    %869 = vmatpush1.bf16.msra.mxu0 0
    %870 = vmatprep.subr.bf16.mxu0 0
    %871 = vmatpush1.bf16.msra.mxu0 0
    %872 = vmatprep.subr.bf16.mxu0 0
    %873 = vmatpush1.bf16.msra.mxu0 0
    %874 = vmatprep.subr.bf16.mxu0 0
    %875 = vmatpush1.bf16.msra.mxu0 0
    %876 = vmatprep.subr.bf16.mxu0 0
    %877 = vmatpush1.bf16.msra.mxu0 0
    %878 = vmatprep.mubr.bf16.mxu0 0
    %879 = vmatmul.mubr.bf16.gmra.mrb[0].mxu0 %v838
    %v880 = vpop.f32.mrb[0].mxu0
    %v881 = vadd.f32 %v842, %v880
    %v882 = vpop.f32.mrb[0].mxu0
    %v883 = vadd.f32 %v843, %v882
    %v884 = vpop.f32.mrb[0].mxu0
    %v885 = vpop.f32.mrb[0].mxu0
    %886 = vdwg.mxu0
    %887 = vmatprep.subr.bf16.mxu0 %v245
    %888 = vmatpush1.bf16.msra.mxu0 %v244
    %889 = vmatprep.subr.bf16.mxu0 %v249
    %890 = vmatpush1.bf16.msra.mxu0 %v248
    %891 = vmatprep.subr.bf16.mxu0 %v253
    %892 = vmatpush1.bf16.msra.mxu0 %v252
    %893 = vmatprep.subr.bf16.mxu0 %v257
    %894 = vmatpush1.bf16.msra.mxu0 %v256
    %895 = vmatprep.subr.bf16.mxu0 %v261
    %896 = vmatpush1.bf16.msra.mxu0 %v260
    %897 = vmatprep.subr.bf16.mxu0 %v265
    %898 = vmatpush1.bf16.msra.mxu0 %v264
    %899 = vmatprep.subr.bf16.mxu0 %v269
    %900 = vmatpush1.bf16.msra.mxu0 %v268
    %901 = vmatprep.subr.bf16.mxu0 %v273
    %902 = vmatpush1.bf16.msra.mxu0 %v272
    %903 = vmatprep.subr.bf16.mxu0 0
    %904 = vmatpush1.bf16.msra.mxu0 0
    %905 = vmatprep.subr.bf16.mxu0 0
    %906 = vmatpush1.bf16.msra.mxu0 0
    %907 = vmatprep.subr.bf16.mxu0 0
    %908 = vmatpush1.bf16.msra.mxu0 0
    %909 = vmatprep.subr.bf16.mxu0 0
    %910 = vmatpush1.bf16.msra.mxu0 0
    %911 = vmatprep.subr.bf16.mxu0 0
    %912 = vmatpush1.bf16.msra.mxu0 0
    %913 = vmatprep.subr.bf16.mxu0 0
    %914 = vmatpush1.bf16.msra.mxu0 0
    %915 = vmatprep.subr.bf16.mxu0 0
    %916 = vmatpush1.bf16.msra.mxu0 0
    %917 = vmatprep.subr.bf16.mxu0 0
    %918 = vmatpush1.bf16.msra.mxu0 0
    %919 = vmatprep.mubr.bf16.mxu0 0
    %920 = vmatmul.mubr.bf16.gmra.mrb[0].mxu0 %v838
    %v921 = vpop.f32.mrb[0].mxu0
    %v922 = vadd.f32 %v844, %v921
    %v923 = vpop.f32.mrb[0].mxu0
    %v924 = vadd.f32 %v845, %v923
    %v925 = vpop.f32.mrb[0].mxu0
    %v926 = vpop.f32.mrb[0].mxu0
    %927 = vdwg.mxu0
    %v928 = vmul.f32 %v881, 0.5
    %v929 = vtanh.pop %v928
    %v930 = vadd.f32 %v929, 1.0
    %v931 = vmul.f32 %v930, 0.5
    %v932 = vmul.f32 %v883, 0.5
    %v933 = vtanh.pop %v932
    %v934 = vadd.f32 %v933, 1.0
    %v935 = vmul.f32 %v934, 0.5
    %v936 = vtanh.pop %v922
    %v937 = vmul.f32 %v924, 0.5
    %v938 = vtanh.pop %v937
    %v939 = vadd.f32 %v938, 1.0
    %v940 = vmul.f32 %v939, 0.5
    %v941 = vmul.f32 %v935, %v835
    %v942 = vmul.f32 %v931, %v936
    %v943 = vadd.f32 %v941, %v942
    %v944 = vtanh.pop %v943
    %v945 = vmul.f32 %v940, %v944
    %v946 = vpack.c.bf16 %v945, %v945
    %s947 = scalar_lea.vmem [#allocation4], 96
    %v948 = vld [vmem:[%s947] sm:$0xff]
    %v949 = vld [vmem:[%s947 + $0x8] sm:$0xff]
    %v950 = vunpack.c.l.bf16 %v948
    %v951 = vunpack.c.h.bf16 %v948
    %v952 = vunpack.c.l.bf16 %v949
    %v953 = vunpack.c.h.bf16 %v949
    %954 = vmatprep.subr.bf16.mxu0 %v243
    %955 = vmatpush1.bf16.msra.mxu0 %v242
    %956 = vmatprep.subr.bf16.mxu0 %v247
    %957 = vmatpush1.bf16.msra.mxu0 %v246
    %958 = vmatprep.subr.bf16.mxu0 %v251
    %959 = vmatpush1.bf16.msra.mxu0 %v250
    %960 = vmatprep.subr.bf16.mxu0 %v255
    %961 = vmatpush1.bf16.msra.mxu0 %v254
    %962 = vmatprep.subr.bf16.mxu0 %v259
    %963 = vmatpush1.bf16.msra.mxu0 %v258
    %964 = vmatprep.subr.bf16.mxu0 %v263
    %965 = vmatpush1.bf16.msra.mxu0 %v262
    %966 = vmatprep.subr.bf16.mxu0 %v267
    %967 = vmatpush1.bf16.msra.mxu0 %v266
    %968 = vmatprep.subr.bf16.mxu0 %v271
    %969 = vmatpush1.bf16.msra.mxu0 %v270
    %970 = vmatprep.subr.bf16.mxu0 0
    %971 = vmatpush1.bf16.msra.mxu0 0
    %972 = vmatprep.subr.bf16.mxu0 0
    %973 = vmatpush1.bf16.msra.mxu0 0
    %974 = vmatprep.subr.bf16.mxu0 0
    %975 = vmatpush1.bf16.msra.mxu0 0
    %976 = vmatprep.subr.bf16.mxu0 0
    %977 = vmatpush1.bf16.msra.mxu0 0
    %978 = vmatprep.subr.bf16.mxu0 0
    %979 = vmatpush1.bf16.msra.mxu0 0
    %980 = vmatprep.subr.bf16.mxu0 0
    %981 = vmatpush1.bf16.msra.mxu0 0
    %982 = vmatprep.subr.bf16.mxu0 0
    %983 = vmatpush1.bf16.msra.mxu0 0
    %984 = vmatprep.subr.bf16.mxu0 0
    %985 = vmatpush1.bf16.msra.mxu0 0
    %986 = vmatprep.mubr.bf16.mxu0 0
    %987 = vmatmul.mubr.bf16.gmra.mrb[0].mxu0 %v946
    %v988 = vpop.f32.mrb[0].mxu0
    %v989 = vadd.f32 %v950, %v988
    %v990 = vpop.f32.mrb[0].mxu0
    %v991 = vadd.f32 %v951, %v990
    %v992 = vpop.f32.mrb[0].mxu0
    %v993 = vpop.f32.mrb[0].mxu0
    %994 = vdwg.mxu0
    %995 = vmatprep.subr.bf16.mxu0 %v245
    %996 = vmatpush1.bf16.msra.mxu0 %v244
    %997 = vmatprep.subr.bf16.mxu0 %v249
    %998 = vmatpush1.bf16.msra.mxu0 %v248
    %999 = vmatprep.subr.bf16.mxu0 %v253
    %1000 = vmatpush1.bf16.msra.mxu0 %v252
    %1001 = vmatprep.subr.bf16.mxu0 %v257
    %1002 = vmatpush1.bf16.msra.mxu0 %v256
    %1003 = vmatprep.subr.bf16.mxu0 %v261
    %1004 = vmatpush1.bf16.msra.mxu0 %v260
    %1005 = vmatprep.subr.bf16.mxu0 %v265
    %1006 = vmatpush1.bf16.msra.mxu0 %v264
    %1007 = vmatprep.subr.bf16.mxu0 %v269
    %1008 = vmatpush1.bf16.msra.mxu0 %v268
    %1009 = vmatprep.subr.bf16.mxu0 %v273
    %1010 = vmatpush1.bf16.msra.mxu0 %v272
    %1011 = vmatprep.subr.bf16.mxu0 0
    %1012 = vmatpush1.bf16.msra.mxu0 0
    %1013 = vmatprep.subr.bf16.mxu0 0
    %1014 = vmatpush1.bf16.msra.mxu0 0
    %1015 = vmatprep.subr.bf16.mxu0 0
    %1016 = vmatpush1.bf16.msra.mxu0 0
    %1017 = vmatprep.subr.bf16.mxu0 0
    %1018 = vmatpush1.bf16.msra.mxu0 0
    %1019 = vmatprep.subr.bf16.mxu0 0
    %1020 = vmatpush1.bf16.msra.mxu0 0
    %1021 = vmatprep.subr.bf16.mxu0 0
    %1022 = vmatpush1.bf16.msra.mxu0 0
    %1023 = vmatprep.subr.bf16.mxu0 0
    %1024 = vmatpush1.bf16.msra.mxu0 0
    %1025 = vmatprep.subr.bf16.mxu0 0
    %1026 = vmatpush1.bf16.msra.mxu0 0
    %1027 = vmatprep.mubr.bf16.mxu0 0
    %1028 = vmatmul.mubr.bf16.gmra.mrb[0].mxu0 %v946
    %v1029 = vpop.f32.mrb[0].mxu0
    %v1030 = vadd.f32 %v952, %v1029
    %v1031 = vpop.f32.mrb[0].mxu0
    %v1032 = vadd.f32 %v953, %v1031
    %v1033 = vpop.f32.mrb[0].mxu0
    %v1034 = vpop.f32.mrb[0].mxu0
    %1035 = vdwg.mxu0
    %v1036 = vmul.f32 %v989, 0.5
    %v1037 = vtanh.pop %v1036
    %v1038 = vadd.f32 %v1037, 1.0
    %v1039 = vmul.f32 %v1038, 0.5
    %v1040 = vmul.f32 %v991, 0.5
    %v1041 = vtanh.pop %v1040
    %v1042 = vadd.f32 %v1041, 1.0
    %v1043 = vmul.f32 %v1042, 0.5
    %v1044 = vtanh.pop %v1030
    %v1045 = vmul.f32 %v1032, 0.5
    %v1046 = vtanh.pop %v1045
    %v1047 = vadd.f32 %v1046, 1.0
    %v1048 = vmul.f32 %v1047, 0.5
    %v1049 = vmul.f32 %v1043, %v943
    %v1050 = vmul.f32 %v1039, %v1044
    %v1051 = vadd.f32 %v1049, %v1050
    %v1052 = vtanh.pop %v1051
    %v1053 = vmul.f32 %v1048, %v1052
    %v1054 = vpack.c.bf16 %v1053, %v1053
    %s1055 = scalar_lea.vmem [#allocation4], 112
    %v1056 = vld [vmem:[%s1055] sm:$0xff]
    %v1057 = vld [vmem:[%s1055 + $0x8] sm:$0xff]
    %v1058 = vunpack.c.l.bf16 %v1056
    %v1059 = vunpack.c.h.bf16 %v1056
    %v1060 = vunpack.c.l.bf16 %v1057
    %v1061 = vunpack.c.h.bf16 %v1057
    %1062 = vmatprep.subr.bf16.mxu0 %v243
    %1063 = vmatpush1.bf16.msra.mxu0 %v242
    %1064 = vmatprep.subr.bf16.mxu0 %v247
    %1065 = vmatpush1.bf16.msra.mxu0 %v246
    %1066 = vmatprep.subr.bf16.mxu0 %v251
    %1067 = vmatpush1.bf16.msra.mxu0 %v250
    %1068 = vmatprep.subr.bf16.mxu0 %v255
    %1069 = vmatpush1.bf16.msra.mxu0 %v254
    %1070 = vmatprep.subr.bf16.mxu0 %v259
    %1071 = vmatpush1.bf16.msra.mxu0 %v258
    %1072 = vmatprep.subr.bf16.mxu0 %v263
    %1073 = vmatpush1.bf16.msra.mxu0 %v262
    %1074 = vmatprep.subr.bf16.mxu0 %v267
    %1075 = vmatpush1.bf16.msra.mxu0 %v266
    %1076 = vmatprep.subr.bf16.mxu0 %v271
    %1077 = vmatpush1.bf16.msra.mxu0 %v270
    %1078 = vmatprep.subr.bf16.mxu0 0
    %1079 = vmatpush1.bf16.msra.mxu0 0
    %1080 = vmatprep.subr.bf16.mxu0 0
    %1081 = vmatpush1.bf16.msra.mxu0 0
    %1082 = vmatprep.subr.bf16.mxu0 0
    %1083 = vmatpush1.bf16.msra.mxu0 0
    %1084 = vmatprep.subr.bf16.mxu0 0
    %1085 = vmatpush1.bf16.msra.mxu0 0
    %1086 = vmatprep.subr.bf16.mxu0 0
    %1087 = vmatpush1.bf16.msra.mxu0 0
    %1088 = vmatprep.subr.bf16.mxu0 0
    %1089 = vmatpush1.bf16.msra.mxu0 0
    %1090 = vmatprep.subr.bf16.mxu0 0
    %1091 = vmatpush1.bf16.msra.mxu0 0
    %1092 = vmatprep.subr.bf16.mxu0 0
    %1093 = vmatpush1.bf16.msra.mxu0 0
    %1094 = vmatprep.mubr.bf16.mxu0 0
    %1095 = vmatmul.mubr.bf16.gmra.mrb[0].mxu0 %v1054
    %v1096 = vpop.f32.mrb[0].mxu0
    %v1097 = vadd.f32 %v1058, %v1096
    %v1098 = vpop.f32.mrb[0].mxu0
    %v1099 = vadd.f32 %v1059, %v1098
    %v1100 = vpop.f32.mrb[0].mxu0
    %v1101 = vpop.f32.mrb[0].mxu0
    %1102 = vdwg.mxu0
    %1103 = vmatprep.subr.bf16.mxu0 %v245
    %1104 = vmatpush1.bf16.msra.mxu0 %v244
    %1105 = vmatprep.subr.bf16.mxu0 %v249
    %1106 = vmatpush1.bf16.msra.mxu0 %v248
    %1107 = vmatprep.subr.bf16.mxu0 %v253
    %1108 = vmatpush1.bf16.msra.mxu0 %v252
    %1109 = vmatprep.subr.bf16.mxu0 %v257
    %1110 = vmatpush1.bf16.msra.mxu0 %v256
    %1111 = vmatprep.subr.bf16.mxu0 %v261
    %1112 = vmatpush1.bf16.msra.mxu0 %v260
    %1113 = vmatprep.subr.bf16.mxu0 %v265
    %1114 = vmatpush1.bf16.msra.mxu0 %v264
    %1115 = vmatprep.subr.bf16.mxu0 %v269
    %1116 = vmatpush1.bf16.msra.mxu0 %v268
    %1117 = vmatprep.subr.bf16.mxu0 %v273
    %1118 = vmatpush1.bf16.msra.mxu0 %v272
    %1119 = vmatprep.subr.bf16.mxu0 0
    %1120 = vmatpush1.bf16.msra.mxu0 0
    %1121 = vmatprep.subr.bf16.mxu0 0
    %1122 = vmatpush1.bf16.msra.mxu0 0
    %1123 = vmatprep.subr.bf16.mxu0 0
    %1124 = vmatpush1.bf16.msra.mxu0 0
    %1125 = vmatprep.subr.bf16.mxu0 0
    %1126 = vmatpush1.bf16.msra.mxu0 0
    %1127 = vmatprep.subr.bf16.mxu0 0
    %1128 = vmatpush1.bf16.msra.mxu0 0
    %1129 = vmatprep.subr.bf16.mxu0 0
    %1130 = vmatpush1.bf16.msra.mxu0 0
    %1131 = vmatprep.subr.bf16.mxu0 0
    %1132 = vmatpush1.bf16.msra.mxu0 0
    %1133 = vmatprep.subr.bf16.mxu0 0
    %1134 = vmatpush1.bf16.msra.mxu0 0
    %1135 = vmatprep.mubr.bf16.mxu0 0
    %1136 = vmatmul.mubr.bf16.gmra.mrb[0].mxu0 %v1054
    %v1137 = vpop.f32.mrb[0].mxu0
    %v1138 = vadd.f32 %v1060, %v1137
    %v1139 = vpop.f32.mrb[0].mxu0
    %v1140 = vadd.f32 %v1061, %v1139
    %v1141 = vpop.f32.mrb[0].mxu0
    %v1142 = vpop.f32.mrb[0].mxu0
    %1143 = vdwg.mxu0
    %v1144 = vmul.f32 %v1097, 0.5
    %v1145 = vtanh.pop %v1144
    %v1146 = vadd.f32 %v1145, 1.0
    %v1147 = vmul.f32 %v1146, 0.5
    %v1148 = vmul.f32 %v1099, 0.5
    %v1149 = vtanh.pop %v1148
    %v1150 = vadd.f32 %v1149, 1.0
    %v1151 = vmul.f32 %v1150, 0.5
    %v1152 = vtanh.pop %v1138
    %v1153 = vmul.f32 %v1140, 0.5
    %v1154 = vtanh.pop %v1153
    %v1155 = vadd.f32 %v1154, 1.0
    %v1156 = vmul.f32 %v1155, 0.5
    %v1157 = vmul.f32 %v1151, %v1051
    %v1158 = vmul.f32 %v1147, %v1152
    %v1159 = vadd.f32 %v1157, %v1158
    %v1160 = vtanh.pop %v1159
    %v1161 = vmul.f32 %v1156, %v1160
    %1162 = vst [vmem:[#allocation2] sm:$0xff] %v1161
    %1163 = vst [vmem:[#allocation3] sm:$0xff] %v1159
    // Predicated region
    $region58: #{tpu_custom_call.1} parent=1 // pred_check
      %p1164 = pneg %p99
    $region59: #{tpu_custom_call.1} parent=1 // pred_check_branch
      %1166 = sbr.rel (%p1164) target = $region61
    $region60: #{tpu_custom_call.1} parent=1 // pred_region
      %v1167 = vpack.c.bf16 %v1161, %v1161
      %v1168 = vld [vmem:[#allocation9] sm:$0xf]
      %v1169 = vld [vmem:[#allocation9 + $0x4] sm:$0xf]
      %v1170 = vld [vmem:[#allocation9 + $0x8] sm:$0xf]
      %v1171 = vld [vmem:[#allocation9 + $0xc] sm:$0xf]
      %v1172 = vld [vmem:[#allocation9 + $0x10] sm:$0xf]
      %v1173 = vld [vmem:[#allocation9 + $0x14] sm:$0xf]
      %v1174 = vld [vmem:[#allocation9 + $0x18] sm:$0xf]
      %v1175 = vld [vmem:[#allocation9 + $0x1c] sm:$0xf]
      %v1176 = vld [vmem:[#allocation9 + $0x20] sm:$0xf]
      %v1177 = vld [vmem:[#allocation9 + $0x24] sm:$0xf]
      %v1178 = vld [vmem:[#allocation9 + $0x28] sm:$0xf]
      %v1179 = vld [vmem:[#allocation9 + $0x2c] sm:$0xf]
      %v1180 = vld [vmem:[#allocation9 + $0x30] sm:$0xf]
      %v1181 = vld [vmem:[#allocation9 + $0x34] sm:$0xf]
      %v1182 = vld [vmem:[#allocation9 + $0x38] sm:$0xf]
      %v1183 = vld [vmem:[#allocation9 + $0x3c] sm:$0xf]
      %v1184 = vld [vmem:[%s3] sm:$0x1]
      %v1186 = vlaneseq
      %v1187 = vshrl.u32 %v1186, 7
      %v1188 = vsub.s32 0, %v1187
      %v1189 = vrot.slane %v1184, %v1188
      %v1207 = vunpack.c.l.b16 %v1168
      %v1208 = vunpack.c.l.b16 %v1169
      %v1209 = vunpack.c.l.b16 %v1170
      %v1210 = vunpack.c.l.b16 %v1171
      %v1211 = vunpack.c.l.b16 %v1172
      %v1212 = vunpack.c.l.b16 %v1173
      %v1213 = vunpack.c.l.b16 %v1174
      %v1214 = vunpack.c.l.b16 %v1175
      %v1215 = vunpack.c.l.b16 %v1176
      %v1216 = vunpack.c.l.b16 %v1177
      %v1217 = vunpack.c.l.b16 %v1178
      %v1218 = vunpack.c.l.b16 %v1179
      %v1219 = vunpack.c.l.b16 %v1180
      %v1220 = vunpack.c.l.b16 %v1181
      %v1221 = vunpack.c.l.b16 %v1182
      %v1222 = vunpack.c.l.b16 %v1183
      %v1223 = vpack.c.b16 %v1208, %v1207
      %v1224 = vpack.c.b16 %v1210, %v1209
      %v1225 = vpack.c.b16 %v1212, %v1211
      %v1226 = vpack.c.b16 %v1214, %v1213
      %v1227 = vpack.c.b16 %v1216, %v1215
      %v1228 = vpack.c.b16 %v1218, %v1217
      %v1229 = vpack.c.b16 %v1220, %v1219
      %v1230 = vpack.c.b16 %v1222, %v1221
      %1239 = vmatprep.subr.bf16.mxu0 0
      %1240 = vmatpush1.bf16.msra.mxu0 %v1223
      %1241 = vmatprep.subr.bf16.mxu0 0
      %1242 = vmatpush1.bf16.msra.mxu0 %v1224
      %1243 = vmatprep.subr.bf16.mxu0 0
      %1244 = vmatpush1.bf16.msra.mxu0 %v1225
      %1245 = vmatprep.subr.bf16.mxu0 0
      %1246 = vmatpush1.bf16.msra.mxu0 %v1226
      %1247 = vmatprep.subr.bf16.mxu0 0
      %1248 = vmatpush1.bf16.msra.mxu0 %v1227
      %1249 = vmatprep.subr.bf16.mxu0 0
      %1250 = vmatpush1.bf16.msra.mxu0 %v1228
      %1251 = vmatprep.subr.bf16.mxu0 0
      %1252 = vmatpush1.bf16.msra.mxu0 %v1229
      %1253 = vmatprep.subr.bf16.mxu0 0
      %1254 = vmatpush1.bf16.msra.mxu0 %v1230
      %1255 = vmatprep.subr.bf16.mxu0 0
      %1256 = vmatpush1.bf16.msra.mxu0 0
      %1257 = vmatprep.subr.bf16.mxu0 0
      %1258 = vmatpush1.bf16.msra.mxu0 0
      %1259 = vmatprep.subr.bf16.mxu0 0
      %1260 = vmatpush1.bf16.msra.mxu0 0
      %1261 = vmatprep.subr.bf16.mxu0 0
      %1262 = vmatpush1.bf16.msra.mxu0 0
      %1263 = vmatprep.subr.bf16.mxu0 0
      %1264 = vmatpush1.bf16.msra.mxu0 0
      %1265 = vmatprep.subr.bf16.mxu0 0
      %1266 = vmatpush1.bf16.msra.mxu0 0
      %1267 = vmatprep.subr.bf16.mxu0 0
      %1268 = vmatpush1.bf16.msra.mxu0 0
      %1269 = vmatprep.subr.bf16.mxu0 0
      %1270 = vmatpush1.bf16.msra.mxu0 0
      %1271 = vmatprep.mubr.bf16.mxu0 0
      %1272 = vmatmul.mubr.bf16.gmra.mrb[0].mxu0 %v1167
      %v1273 = vpop.f32.mrb[0].mxu0
      %v1274 = vadd.f32 %v1189, %v1273
      %v1275 = vpop.f32.mrb[0].mxu0
      %v1276 = vpop.f32.mrb[0].mxu0
      %v1277 = vpop.f32.mrb[0].mxu0
      %1278 = vdwg.mxu0
      %v1279 = vmax.f32 %v1274, 0.0
      %v1280 = vpack.c.bf16 %v1279, %v1279
      %v1281 = vld [vmem:[#allocation10] sm:$0xf]
      %v1282 = vld [vmem:[#allocation10 + $0x4] sm:$0xf]
      %v1283 = vld [vmem:[#allocation10 + $0x8] sm:$0xf]
      %v1284 = vld [vmem:[#allocation10 + $0xc] sm:$0xf]
      %v1285 = vld [vmem:[#allocation10 + $0x10] sm:$0xf]
      %v1286 = vld [vmem:[#allocation10 + $0x14] sm:$0xf]
      %v1287 = vld [vmem:[#allocation10 + $0x18] sm:$0xf]
      %v1288 = vld [vmem:[#allocation10 + $0x1c] sm:$0xf]
      %v1289 = vld [vmem:[#allocation10 + $0x20] sm:$0xf]
      %v1290 = vld [vmem:[#allocation10 + $0x24] sm:$0xf]
      %v1291 = vld [vmem:[#allocation10 + $0x28] sm:$0xf]
      %v1292 = vld [vmem:[#allocation10 + $0x2c] sm:$0xf]
      %v1293 = vld [vmem:[#allocation10 + $0x30] sm:$0xf]
      %v1294 = vld [vmem:[#allocation10 + $0x34] sm:$0xf]
      %v1295 = vld [vmem:[#allocation10 + $0x38] sm:$0xf]
      %v1296 = vld [vmem:[#allocation10 + $0x3c] sm:$0xf]
      %v1297 = vld [vmem:[%s5] sm:$0x1]
      %v1299 = vlaneseq
      %v1300 = vshrl.u32 %v1299, 7
      %v1301 = vsub.s32 0, %v1300
      %v1302 = vrot.slane %v1297, %v1301
      %v1320 = vunpack.c.l.b16 %v1281
      %v1321 = vunpack.c.l.b16 %v1282
      %v1322 = vunpack.c.l.b16 %v1283
      %v1323 = vunpack.c.l.b16 %v1284
      %v1324 = vunpack.c.l.b16 %v1285
      %v1325 = vunpack.c.l.b16 %v1286
      %v1326 = vunpack.c.l.b16 %v1287
      %v1327 = vunpack.c.l.b16 %v1288
      %v1328 = vunpack.c.l.b16 %v1289
      %v1329 = vunpack.c.l.b16 %v1290
      %v1330 = vunpack.c.l.b16 %v1291
      %v1331 = vunpack.c.l.b16 %v1292
      %v1332 = vunpack.c.l.b16 %v1293
      %v1333 = vunpack.c.l.b16 %v1294
      %v1334 = vunpack.c.l.b16 %v1295
      %v1335 = vunpack.c.l.b16 %v1296
      %v1336 = vpack.c.b16 %v1321, %v1320
      %v1337 = vpack.c.b16 %v1323, %v1322
      %v1338 = vpack.c.b16 %v1325, %v1324
      %v1339 = vpack.c.b16 %v1327, %v1326
      %v1340 = vpack.c.b16 %v1329, %v1328
      %v1341 = vpack.c.b16 %v1331, %v1330
      %v1342 = vpack.c.b16 %v1333, %v1332
      %v1343 = vpack.c.b16 %v1335, %v1334
      %1352 = vmatprep.subr.bf16.mxu0 0
      %1353 = vmatpush1.bf16.msra.mxu0 %v1336
      %1354 = vmatprep.subr.bf16.mxu0 0
      %1355 = vmatpush1.bf16.msra.mxu0 %v1337
      %1356 = vmatprep.subr.bf16.mxu0 0
      %1357 = vmatpush1.bf16.msra.mxu0 %v1338
      %1358 = vmatprep.subr.bf16.mxu0 0
      %1359 = vmatpush1.bf16.msra.mxu0 %v1339
      %1360 = vmatprep.subr.bf16.mxu0 0
      %1361 = vmatpush1.bf16.msra.mxu0 %v1340
      %1362 = vmatprep.subr.bf16.mxu0 0
      %1363 = vmatpush1.bf16.msra.mxu0 %v1341
      %1364 = vmatprep.subr.bf16.mxu0 0
      %1365 = vmatpush1.bf16.msra.mxu0 %v1342
      %1366 = vmatprep.subr.bf16.mxu0 0
      %1367 = vmatpush1.bf16.msra.mxu0 %v1343
      %1368 = vmatprep.subr.bf16.mxu0 0
      %1369 = vmatpush1.bf16.msra.mxu0 0
      %1370 = vmatprep.subr.bf16.mxu0 0
      %1371 = vmatpush1.bf16.msra.mxu0 0
      %1372 = vmatprep.subr.bf16.mxu0 0
      %1373 = vmatpush1.bf16.msra.mxu0 0
      %1374 = vmatprep.subr.bf16.mxu0 0
      %1375 = vmatpush1.bf16.msra.mxu0 0
      %1376 = vmatprep.subr.bf16.mxu0 0
      %1377 = vmatpush1.bf16.msra.mxu0 0
      %1378 = vmatprep.subr.bf16.mxu0 0
      %1379 = vmatpush1.bf16.msra.mxu0 0
      %1380 = vmatprep.subr.bf16.mxu0 0
      %1381 = vmatpush1.bf16.msra.mxu0 0
      %1382 = vmatprep.subr.bf16.mxu0 0
      %1383 = vmatpush1.bf16.msra.mxu0 0
      %1384 = vmatprep.mubr.bf16.mxu0 0
      %1385 = vmatmul.mubr.bf16.gmra.mrb[0].mxu0 %v1280
      %v1386 = vpop.f32.mrb[0].mxu0
      %v1387 = vadd.f32 %v1302, %v1386
      %v1388 = vpop.f32.mrb[0].mxu0
      %v1389 = vpop.f32.mrb[0].mxu0
      %v1390 = vpop.f32.mrb[0].mxu0
      %1391 = vdwg.mxu0
      %v1392 = vmax.f32 %v1387, 0.0
      %v1393 = vpack.c.bf16 %v1392, %v1392
      %v1394 = vld [vmem:[#allocation12] sm:$0xf]
      %v1395 = vld [vmem:[#allocation12 + $0x4] sm:$0xf]
      %v1396 = vld [vmem:[#allocation12 + $0x8] sm:$0xf]
      %v1397 = vld [vmem:[#allocation12 + $0xc] sm:$0xf]
      %v1398 = vld [vmem:[#allocation12 + $0x10] sm:$0xf]
      %v1399 = vld [vmem:[#allocation12 + $0x14] sm:$0xf]
      %v1400 = vld [vmem:[#allocation12 + $0x18] sm:$0xf]
      %v1401 = vld [vmem:[#allocation12 + $0x1c] sm:$0xf]
      %v1402 = vld [vmem:[#allocation12 + $0x20] sm:$0xf]
      %v1403 = vld [vmem:[#allocation12 + $0x24] sm:$0xf]
      %v1404 = vld [vmem:[#allocation12 + $0x28] sm:$0xf]
      %v1405 = vld [vmem:[#allocation12 + $0x2c] sm:$0xf]
      %v1406 = vld [vmem:[#allocation12 + $0x30] sm:$0xf]
      %v1407 = vld [vmem:[#allocation12 + $0x34] sm:$0xf]
      %v1408 = vld [vmem:[#allocation12 + $0x38] sm:$0xf]
      %v1409 = vld [vmem:[#allocation12 + $0x3c] sm:$0xf]
      %v1410 = vld [vmem:[%s7] sm:$0x1]
      %v1412 = vlaneseq
      %v1413 = vshrl.u32 %v1412, 7
      %v1414 = vsub.s32 0, %v1413
      %v1415 = vrot.slane %v1410, %v1414
      %v1433 = vunpack.c.l.b16 %v1394
      %v1434 = vunpack.c.l.b16 %v1395
      %v1435 = vunpack.c.l.b16 %v1396
      %v1436 = vunpack.c.l.b16 %v1397
      %v1437 = vunpack.c.l.b16 %v1398
      %v1438 = vunpack.c.l.b16 %v1399
      %v1439 = vunpack.c.l.b16 %v1400
      %v1440 = vunpack.c.l.b16 %v1401
      %v1441 = vunpack.c.l.b16 %v1402
      %v1442 = vunpack.c.l.b16 %v1403
      %v1443 = vunpack.c.l.b16 %v1404
      %v1444 = vunpack.c.l.b16 %v1405
      %v1445 = vunpack.c.l.b16 %v1406
      %v1446 = vunpack.c.l.b16 %v1407
      %v1447 = vunpack.c.l.b16 %v1408
      %v1448 = vunpack.c.l.b16 %v1409
      %v1449 = vpack.c.b16 %v1434, %v1433
      %v1450 = vpack.c.b16 %v1436, %v1435
      %v1451 = vpack.c.b16 %v1438, %v1437
      %v1452 = vpack.c.b16 %v1440, %v1439
      %v1453 = vpack.c.b16 %v1442, %v1441
      %v1454 = vpack.c.b16 %v1444, %v1443
      %v1455 = vpack.c.b16 %v1446, %v1445
      %v1456 = vpack.c.b16 %v1448, %v1447
      %1465 = vmatprep.subr.bf16.mxu0 0
      %1466 = vmatpush1.bf16.msra.mxu0 %v1449
      %1467 = vmatprep.subr.bf16.mxu0 0
      %1468 = vmatpush1.bf16.msra.mxu0 %v1450
      %1469 = vmatprep.subr.bf16.mxu0 0
      %1470 = vmatpush1.bf16.msra.mxu0 %v1451
      %1471 = vmatprep.subr.bf16.mxu0 0
      %1472 = vmatpush1.bf16.msra.mxu0 %v1452
      %1473 = vmatprep.subr.bf16.mxu0 0
      %1474 = vmatpush1.bf16.msra.mxu0 %v1453
      %1475 = vmatprep.subr.bf16.mxu0 0
      %1476 = vmatpush1.bf16.msra.mxu0 %v1454
      %1477 = vmatprep.subr.bf16.mxu0 0
      %1478 = vmatpush1.bf16.msra.mxu0 %v1455
      %1479 = vmatprep.subr.bf16.mxu0 0
      %1480 = vmatpush1.bf16.msra.mxu0 %v1456
      %1481 = vmatprep.subr.bf16.mxu0 0
      %1482 = vmatpush1.bf16.msra.mxu0 0
      %1483 = vmatprep.subr.bf16.mxu0 0
      %1484 = vmatpush1.bf16.msra.mxu0 0
      %1485 = vmatprep.subr.bf16.mxu0 0
      %1486 = vmatpush1.bf16.msra.mxu0 0
      %1487 = vmatprep.subr.bf16.mxu0 0
      %1488 = vmatpush1.bf16.msra.mxu0 0
      %1489 = vmatprep.subr.bf16.mxu0 0
      %1490 = vmatpush1.bf16.msra.mxu0 0
      %1491 = vmatprep.subr.bf16.mxu0 0
      %1492 = vmatpush1.bf16.msra.mxu0 0
      %1493 = vmatprep.subr.bf16.mxu0 0
      %1494 = vmatpush1.bf16.msra.mxu0 0
      %1495 = vmatprep.subr.bf16.mxu0 0
      %1496 = vmatpush1.bf16.msra.mxu0 0
      %1497 = vmatprep.mubr.bf16.mxu0 0
      %1498 = vmatmul.mubr.bf16.gmra.mrb[0].mxu0 %v1393
      %v1499 = vpop.f32.mrb[0].mxu0
      %v1500 = vadd.f32 %v1415, %v1499
      %v1501 = vpop.f32.mrb[0].mxu0
      %v1502 = vpop.f32.mrb[0].mxu0
      %v1503 = vpop.f32.mrb[0].mxu0
      %1504 = vdwg.mxu0
      %1505 = vst [vmem:[#allocation13] sm:$0xff] %v1500
    $region61: #{tpu_custom_call.1} parent=1 // pred_fallthru
      _
    // Predicated region
    $region62: #{tpu_custom_call.1} parent=1 // pred_check
      _
    $region63: #{tpu_custom_call.1} parent=1 // pred_check_branch
      %1507 = sbr.rel (0) target = $region65
    $region64: #{tpu_custom_call.1} parent=1 // pred_region
      %s1509 = ssub.s32 128, 128
      %1510 = vsyncadd [#allocation6], %s1509
      %s1512 = sshll.u32 [#allocation13], 4
      %s1513 = int_to_ptr.vmem [resolvable:$true] %s1512
      %1515 = dma.vmem_to_hbm [thread:$0]  %s1513, 128, %s8, [#allocation6]
    $region65: #{tpu_custom_call.1} parent=1 // pred_fallthru
      _
    // Predicated region
    $region66: #{tpu_custom_call.1} parent=1 // pred_check
      _
    $region67: #{tpu_custom_call.1} parent=1 // pred_check_branch
      %1517 = sbr.rel (0) target = $region69
    $region68: #{tpu_custom_call.1} parent=1 // pred_region
      %1518 = dma.done [#allocation6], 128
    $region69: #{tpu_custom_call.1} parent=1 // pred_fallthru
      _
    %1519 = vsyncpa [#allocation5], 1
    %1520 = vsyncpa [#allocation8], 1
    %1521 = vsyncpa [#allocation11], 1
    %1522 = vsyncpa [#allocation6], 1

</llo_original>
